<compile_context>
chip_gen: v7x
topology: tpu7x:2x2x1
jax: 0.10.0
libtpu: 0.0.40
codegen_flags: <defaults>
</compile_context>

<pallas_src>
import functools

import jax
import jax.numpy as jnp
import numpy as np
from jax.experimental import pallas as pl
from jax.experimental.pallas import tpu as pltpu

LN_EPS = 1e-5


def _round_up(x, m):
    return ((x + m - 1) // m) * m


# ---------------------------------------------------------------------------
# Bilinear x2 upsample (PyTorch align_corners=False) as dense interp matmuls.
# ---------------------------------------------------------------------------
def _interp_matrix(out_len, in_len):
    src = (np.arange(out_len, dtype=np.float64) + 0.5) * (in_len / out_len) - 0.5
    src = np.maximum(src, 0.0)
    i0 = np.minimum(np.floor(src).astype(np.int64), in_len - 1)
    i1 = np.minimum(i0 + 1, in_len - 1)
    w1 = src - i0
    w0 = 1.0 - w1
    m = np.zeros((out_len, in_len), dtype=np.float32)
    m[np.arange(out_len), i0] += w0.astype(np.float32)
    m[np.arange(out_len), i1] += w1.astype(np.float32)
    return jnp.asarray(m)


def upsample_bilinear_x2(x):
    # x: (B, N, H, W) -> (B, N, 2H, 2W), no gathers (pure matmuls in XLA).
    H, W = x.shape[-2:]
    rh = _interp_matrix(2 * H, H)
    rw = _interp_matrix(2 * W, W)
    return jnp.einsum('ih,bnhw,jw->bnij', rh, x, rw)


# ---------------------------------------------------------------------------
# Fused kernel: assemble (reduction over HW tiles) + head update
# ---------------------------------------------------------------------------
def headupdator_kernel(pred_ref, feat_ref, head_ref,
                       w_pt_ref, w_ht_ref, tb_ref,
                       w_gate_ref, gate_b_ref,
                       w_fc_ref, b_fc_ref, ln_g_ref, ln_b_ref,
                       out_ref, acc_ref, *, f_real, fp):
    k = pl.program_id(1)

    @pl.when(k == 0)
    def _():
        acc_ref[...] = jnp.zeros_like(acc_ref)

    # assemble: sigmoid(pred) @ feat, accumulated over the HW grid axis
    p = jax.nn.sigmoid(pred_ref[...]).astype(feat_ref.dtype)          # (n, tk)
    acc_ref[...] += jnp.dot(p, feat_ref[...],
                            preferred_element_type=jnp.float32)       # (n, CinP)

    # head update runs once, on the last HW tile
    @pl.when(k == pl.num_programs(1) - 1)
    def _():
        inv_f = 1.0 / float(f_real)

        def layernorm(x, g, b):
            # Single-pass mean/var. Padded lanes of x are exactly zero, so
            # dividing by the real feature count matches PyTorch LayerNorm;
            # padded gamma/beta are zero -> padded output lanes stay zero.
            s = jnp.sum(x, axis=-1, keepdims=True)
            s2 = jnp.sum(x * x, axis=-1, keepdims=True)
            mu = s * inv_f
            var = s2 * inv_f - mu * mu
            return (x - mu) * jax.lax.rsqrt(var + LN_EPS) * g + b

        asm = acc_ref[...]                                  # (n, CinP) f32
        hd = head_ref[...]                                  # (n, CinP) f32

        # one wide matmul per input; slice into in/out halves afterwards
        pred_feat = jnp.dot(asm, w_pt_ref[...],
                            preferred_element_type=jnp.float32) + tb_ref[0:1, :]
        head_feat = jnp.dot(hd, w_ht_ref[...],
                            preferred_element_type=jnp.float32) + tb_ref[1:2, :]

        pred_in, pred_out = pred_feat[:, :fp], pred_feat[:, fp:]
        head_in, head_out = head_feat[:, :fp], head_feat[:, fp:]

        gate = head_in * pred_in                            # (n, FP)

        # both gate projections in one wide matmul: w_gate = [w_pg | w_hg]
        gates = jnp.dot(gate, w_gate_ref[...],
                        preferred_element_type=jnp.float32) + gate_b_ref[0:1, :]
        pred_gate = jax.nn.sigmoid(
            layernorm(gates[:, :fp], ln_g_ref[0:1, :], ln_b_ref[0:1, :]))
        head_gate = jax.nn.sigmoid(
            layernorm(gates[:, fp:], ln_g_ref[1:2, :], ln_b_ref[1:2, :]))

        pred_out = layernorm(pred_out, ln_g_ref[2:3, :], ln_b_ref[2:3, :])
        head_out = layernorm(head_out, ln_g_ref[3:4, :], ln_b_ref[3:4, :])

        upd = pred_gate * pred_out + head_gate * head_out
        upd = jnp.dot(upd, w_fc_ref[...],
                      preferred_element_type=jnp.float32) + b_fc_ref[0:1, :]
        upd = layernorm(upd, ln_g_ref[4:5, :], ln_b_ref[4:5, :])
        out_ref[...] = jnp.maximum(upd, 0.0)                # ReLU


# ---------------------------------------------------------------------------
# Parameter init (real sizes, (in, out) = transposed PyTorch Linear weights)
# ---------------------------------------------------------------------------
def init_params(key, cin, f):
    ks = jax.random.split(key, 10)
    w = lambda k, s: jax.random.normal(k, s, jnp.float32) * 0.05
    return dict(
        w_pt=w(ks[0], (cin, 2 * f)), b_pt=w(ks[1], (2 * f,)),
        w_ht=w(ks[2], (cin, 2 * f)), b_ht=w(ks[3], (2 * f,)),
        w_pg=w(ks[4], (f, f)), b_pg=w(ks[5], (f,)),
        w_hg=w(ks[6], (f, f)), b_hg=w(ks[7], (f,)),
        w_fc=w(ks[8], (f, f)), b_fc=w(ks[9], (f,)),
        ln_g=jnp.ones((5, f), jnp.float32),    # [pred_norm_in, head_norm_in,
        ln_b=jnp.zeros((5, f), jnp.float32),   #  pred_norm_out, head_norm_out, fc_norm]
    )


# Pack + zero-pad params to lane-dense (multiples of 128) kernel layout.
def pack_params(p, cin, f):
    cin_p = _round_up(cin, 128)
    f_p = _round_up(f, 128)

    def pad_transform(wt, bias):
        w_pad = jnp.zeros((cin_p, 2 * f_p), jnp.float32)
        w_pad = w_pad.at[:cin, :f].set(wt[:, :f]).at[:cin, f_p:f_p + f].set(wt[:, f:])
        b_pad = jnp.zeros((2 * f_p,), jnp.float32)
        b_pad = b_pad.at[:f].set(bias[:f]).at[f_p:f_p + f].set(bias[f:])
        return w_pad, b_pad

    w_pt, b_pt = pad_transform(p['w_pt'], p['b_pt'])
    w_ht, b_ht = pad_transform(p['w_ht'], p['b_ht'])

    w_gate = jnp.zeros((f_p, 2 * f_p), jnp.float32)
    w_gate = w_gate.at[:f, :f].set(p['w_pg']).at[:f, f_p:f_p + f].set(p['w_hg'])
    gate_b = jnp.zeros((1, 2 * f_p), jnp.float32)
    gate_b = gate_b.at[0, :f].set(p['b_pg']).at[0, f_p:f_p + f].set(p['b_hg'])

    w_fc = jnp.zeros((f_p, f_p), jnp.float32).at[:f, :f].set(p['w_fc'])
    b_fc = jnp.zeros((1, f_p), jnp.float32).at[0, :f].set(p['b_fc'])

    ln_g = jnp.zeros((5, f_p), jnp.float32).at[:, :f].set(p['ln_g'])
    ln_b = jnp.zeros((5, f_p), jnp.float32).at[:, :f].set(p['ln_b'])

    tb = jnp.stack([b_pt, b_ht], axis=0)   # (2, 2*f_p)

    return dict(f=f, cin=cin, cin_p=cin_p, f_p=f_p,
                w_pt=w_pt, w_ht=w_ht, tb=tb, w_gate=w_gate, gate_b=gate_b,
                w_fc=w_fc, b_fc=b_fc, ln_g=ln_g, ln_b=ln_b)


# ---------------------------------------------------------------------------
# Forward wrapper
# ---------------------------------------------------------------------------
def head_updator_forward(packed, feat, head, pred, conv_kernel_size=1, max_tk=2048):
    bs, n = head.shape[:2]
    cin = feat.shape[1]
    H, W = feat.shape[2], feat.shape[3]
    hw = H * W
    f, cin_p, f_p = packed['f'], packed['cin_p'], packed['f_p']
    if head.ndim == 5:                       # (bs, n, cin, 1, 1) -> (bs, n, cin)
        head = head.reshape(bs, n, cin)

    # x2 bilinear upsample (matmul form); sigmoid happens inside the kernel
    pred_up = upsample_bilinear_x2(pred).reshape(bs, n, hw).astype(jnp.float32)

    # feat as (B, HW, C): MXU RHS needs no in-kernel transpose; pad channels to
    # a lane-dense multiple of 128 and store bf16 (f32 accumulation on the MXU)
    feat_p = jnp.transpose(feat.reshape(bs, cin, hw), (0, 2, 1))
    feat_p = jnp.pad(feat_p, ((0, 0), (0, 0), (0, cin_p - cin))).astype(jnp.bfloat16)
    head_p = jnp.pad(head.astype(jnp.float32), ((0, 0), (0, 0), (0, cin_p - cin)))

    # HW reduction tile: multiple of 128 (lane-dense pred tiles), <= max_tk
    if hw % 128 == 0:
        tk = min(max_tk, hw)
        tk -= tk % 128
        while hw % tk:
            tk -= 128
    else:
        tk = hw
    kt = hw // tk

    cost = pl.CostEstimate(
        flops=2 * bs * n * hw * cin_p
              + 2 * bs * n * (2 * cin_p * 2 * f_p + f_p * 2 * f_p + f_p * f_p),
        transcendentals=bs * n * (hw + 2 * f_p + 5),
        bytes_accessed=4 * bs * n * hw + 2 * bs * hw * cin_p
                       + 4 * bs * n * cin_p + 4 * bs * n * f_p
                       + 4 * (2 * cin_p * 2 * f_p + f_p * 2 * f_p + f_p * f_p),
    )

    kernel = functools.partial(headupdator_kernel, f_real=f, fp=f_p)

    def full(shape):
        return pl.BlockSpec(shape, lambda b, k: (0,) * len(shape))

    out = pl.pallas_call(
        kernel,
        out_shape=jax.ShapeDtypeStruct((bs, n, f_p), jnp.float32),
        grid=(bs, kt),
        in_specs=[
            pl.BlockSpec((None, n, tk), lambda b, k: (b, 0, k)),       # pred
            pl.BlockSpec((None, tk, cin_p), lambda b, k: (b, k, 0)),   # feat
            pl.BlockSpec((None, n, cin_p), lambda b, k: (b, 0, 0)),    # head
            full((cin_p, 2 * f_p)),     # w_pt
            full((cin_p, 2 * f_p)),     # w_ht
            full((2, 2 * f_p)),         # transform biases [b_pt; b_ht]
            full((f_p, 2 * f_p)),       # w_gate = [w_pg | w_hg]
            full((1, 2 * f_p)),         # gate bias
            full((f_p, f_p)),           # w_fc
            full((1, f_p)),             # b_fc
            full((5, f_p)),             # LN gammas
            full((5, f_p)),             # LN betas
        ],
        out_specs=pl.BlockSpec((None, n, f_p), lambda b, k: (b, 0, 0)),
        scratch_shapes=[pltpu.VMEM((n, cin_p), jnp.float32)],
        compiler_params=pltpu.CompilerParams(
            dimension_semantics=("parallel", "arbitrary")),
        cost_estimate=cost,
    )(pred_up, feat_p, head_p,
      packed['w_pt'], packed['w_ht'], packed['tb'],
      packed['w_gate'], packed['gate_b'],
      packed['w_fc'], packed['b_fc'], packed['ln_g'], packed['ln_b'])

    k = conv_kernel_size                 # K = k*k == 1 positions
    return out[:, :, :f].reshape(bs, n, f, k, k)


# ---------------------------------------------------------------------------
# Pure-JAX f32 reference (PyTorch HeadUpdator semantics) for a sanity check
# ---------------------------------------------------------------------------
def reference_forward(p, feat, head, pred, f):
    bs, n = head.shape[:2]
    cin = feat.shape[1]
    s = jax.nn.sigmoid(upsample_bilinear_x2(pred))
    asm = jnp.einsum('bnhw,bchw->bnc', s, feat).reshape(bs * n, cin)
    hd = head.reshape(bs * n, cin)

    def ln(x, g, b):
        mu = jnp.mean(x, axis=-1, keepdims=True)
        var = jnp.mean(jnp.square(x - mu), axis=-1, keepdims=True)
        return (x - mu) * jax.lax.rsqrt(var + LN_EPS) * g + b

    pred_feat = asm @ p['w_pt'] + p['b_pt']
    head_feat = hd @ p['w_ht'] + p['b_ht']
    pred_in, pred_out = pred_feat[:, :f], pred_feat[:, f:]
    head_in, head_out = head_feat[:, :f], head_feat[:, f:]
    gate = head_in * pred_in
    pred_gate = jax.nn.sigmoid(ln(gate @ p['w_pg'] + p['b_pg'], p['ln_g'][0], p['ln_b'][0]))
    head_gate = jax.nn.sigmoid(ln(gate @ p['w_hg'] + p['b_hg'], p['ln_g'][1], p['ln_b'][1]))
    pred_out = ln(pred_out, p['ln_g'][2], p['ln_b'][2])
    head_out = ln(head_out, p['ln_g'][3], p['ln_b'][3])
    upd = pred_gate * pred_out + head_gate * head_out
    upd = ln(upd @ p['w_fc'] + p['b_fc'], p['ln_g'][4], p['ln_b'][4])
    return jnp.maximum(upd, 0.0).reshape(bs, n, f, 1, 1)


# ---------------------------------------------------------------------------
if __name__ == "__main__":
    key = jax.random.PRNGKey(0)
    k_feat, k_head, k_pred, k_param = jax.random.split(key, 4)

    bs, num_classes = 2, 8
    cin = feat_channels = 64          # HeadUpdator defaults (in=feat=64)
    H = W = 16

    feat = jax.random.normal(k_feat, (bs, cin, H, W), jnp.float32)
    head = jax.random.normal(k_head, (bs, num_classes, cin), jnp.float32)
    pred = jax.random.normal(k_pred, (bs, num_classes, H // 2, W // 2), jnp.float32)

    real = init_params(k_param, cin, feat_channels)
    packed = pack_params(real, cin, feat_channels)

    out = head_updator_forward(packed, feat, head, pred, conv_kernel_size=1)
    out = jax.block_until_ready(out)
    assert out.shape == (bs, num_classes, feat_channels, 1, 1)

    # tolerance check vs f32 reference (bf16 assemble operands => ~1e-2 drift)
    ref = reference_forward(real, feat, head, pred, feat_channels)
    np.testing.assert_allclose(np.asarray(out), np.asarray(ref), rtol=5e-2, atol=6e-2)

    print("KERNEL_OK")
</pallas_src>

<mosaic_0001>
module attributes {stable_mosaic.version = 11 : i64} {
  func.func @headupdator_kernel(%arg0: i32, %arg1: i32, %arg2: memref<1x8x256xf32, #tpu.memory_space<vmem>>, %arg3: memref<1x256x128xbf16, #tpu.memory_space<vmem>>, %arg4: memref<1x8x128xf32, #tpu.memory_space<vmem>>, %arg5: memref<128x256xf32, #tpu.memory_space<vmem>>, %arg6: memref<128x256xf32, #tpu.memory_space<vmem>>, %arg7: memref<2x256xf32, #tpu.memory_space<vmem>>, %arg8: memref<128x256xf32, #tpu.memory_space<vmem>>, %arg9: memref<1x256xf32, #tpu.memory_space<vmem>>, %arg10: memref<128x128xf32, #tpu.memory_space<vmem>>, %arg11: memref<1x128xf32, #tpu.memory_space<vmem>>, %arg12: memref<5x128xf32, #tpu.memory_space<vmem>>, %arg13: memref<5x128xf32, #tpu.memory_space<vmem>>, %arg14: memref<1x8x128xf32, #tpu.memory_space<vmem>>, %arg15: memref<8x128xf32, #tpu.memory_space<vmem>>) attributes {dimension_semantics = [#tpu.dimension_semantics<parallel>, #tpu.dimension_semantics<arbitrary>], iteration_bounds = array<i64: 2, 1>, scalar_prefetch = 0 : i64, scratch_operands = 1 : i64, tpu.core_type = #tpu.core_type<tc>, window_params = [{transform_indices = @transform_0, window_bounds = array<i64: 1, 8, 256>}, {transform_indices = @transform_1, window_bounds = array<i64: 1, 256, 128>}, {transform_indices = @transform_2, window_bounds = array<i64: 1, 8, 128>}, {pipeline_mode = #tpu.pipeline_mode<synchronous>, transform_indices = @transform_3, window_bounds = array<i64: 128, 256>}, {pipeline_mode = #tpu.pipeline_mode<synchronous>, transform_indices = @transform_4, window_bounds = array<i64: 128, 256>}, {pipeline_mode = #tpu.pipeline_mode<synchronous>, transform_indices = @transform_5, window_bounds = array<i64: 2, 256>}, {pipeline_mode = #tpu.pipeline_mode<synchronous>, transform_indices = @transform_6, window_bounds = array<i64: 128, 256>}, {pipeline_mode = #tpu.pipeline_mode<synchronous>, transform_indices = @transform_7, window_bounds = array<i64: 1, 256>}, {pipeline_mode = #tpu.pipeline_mode<synchronous>, transform_indices = @transform_8, window_bounds = array<i64: 128, 128>}, {pipeline_mode = #tpu.pipeline_mode<synchronous>, transform_indices = @transform_9, window_bounds = array<i64: 1, 128>}, {pipeline_mode = #tpu.pipeline_mode<synchronous>, transform_indices = @transform_10, window_bounds = array<i64: 5, 128>}, {pipeline_mode = #tpu.pipeline_mode<synchronous>, transform_indices = @transform_11, window_bounds = array<i64: 5, 128>}, {transform_indices = @transform_12, window_bounds = array<i64: 1, 8, 128>}]} {
    %c0_i32 = arith.constant 0 : i32
    %0 = arith.cmpi eq, %arg1, %c0_i32 : i32
    %1 = arith.extui %0 : i1 to i32
    %c0_i32_0 = arith.constant 0 : i32
    %2 = arith.cmpi ne, %1, %c0_i32_0 : i32
    scf.if %2 {
      %cst_13 = arith.constant 0.000000e+00 : f32
      %20 = vector.broadcast %cst_13 : f32 to vector<8x128xf32>
      %c0_14 = arith.constant 0 : index
      %c0_15 = arith.constant 0 : index
      %21 = vector.load %arg15[%c0_14, %c0_15] : memref<8x128xf32, #tpu.memory_space<vmem>>, vector<8x128xf32>
      tpu.vector_store %arg15[%c0_14, %c0_15], %20 {strides = array<i32>} : memref<8x128xf32, #tpu.memory_space<vmem>>, vector<8x128xf32>,
    } else {
    }
    %c0 = arith.constant 0 : index
    %c0_1 = arith.constant 0 : index
    %c0_2 = arith.constant 0 : index
    %3 = vector.load %arg2[%c0, %c0_1, %c0_2] : memref<1x8x256xf32, #tpu.memory_space<vmem>>, vector<1x8x256xf32>
    %4 = vector.shape_cast %3 : vector<1x8x256xf32> to vector<8x256xf32>
    %5 = arith.negf %4 : vector<8x256xf32>
    %6 = math.exp %5 : vector<8x256xf32>
    %cst = arith.constant 1.000000e+00 : f32
    %7 = vector.broadcast %cst : f32 to vector<8x256xf32>
    %8 = arith.addf %7, %6 : vector<8x256xf32>
    %9 = arith.divf %7, %8 : vector<8x256xf32>
    %10 = arith.truncf %9 : vector<8x256xf32> to vector<8x256xbf16>
    %c0_3 = arith.constant 0 : index
    %c0_4 = arith.constant 0 : index
    %11 = vector.load %arg15[%c0_3, %c0_4] : memref<8x128xf32, #tpu.memory_space<vmem>>, vector<8x128xf32>
    %c0_5 = arith.constant 0 : index
    %c0_6 = arith.constant 0 : index
    %c0_7 = arith.constant 0 : index
    %12 = vector.load %arg3[%c0_5, %c0_6, %c0_7] : memref<1x256x128xbf16, #tpu.memory_space<vmem>>, vector<1x256x128xbf16>
    %13 = vector.shape_cast %12 : vector<1x256x128xbf16> to vector<256x128xbf16>
    %cst_8 = arith.constant dense<0.000000e+00> : vector<8x128xf32>
    %14 = tpu.matmul %10, %13, %cst_8 {dimension_numbers = #tpu.dot_dimension_numbers<[1], [0], [0], [1], [0, 0, 1, 1], [], []>} : vector<8x256xbf16>, vector<256x128xbf16>, vector<8x128xf32> -> vector<8x128xf32>
    %15 = arith.addf %11, %14 : vector<8x128xf32>
    %c0_9 = arith.constant 0 : index
    %c0_10 = arith.constant 0 : index
    %16 = vector.load %arg15[%c0_9, %c0_10] : memref<8x128xf32, #tpu.memory_space<vmem>>, vector<8x128xf32>
    tpu.vector_store %arg15[%c0_9, %c0_10], %15 {strides = array<i32>} : memref<8x128xf32, #tpu.memory_space<vmem>>, vector<8x128xf32>,
    %c0_i32_11 = arith.constant 0 : i32
    %17 = arith.cmpi eq, %arg1, %c0_i32_11 : i32
    %18 = arith.extui %17 : i1 to i32
    %c0_i32_12 = arith.constant 0 : i32
    %19 = arith.cmpi ne, %18, %c0_i32_12 : i32
    scf.if %19 {
      %c0_13 = arith.constant 0 : index
      %c0_14 = arith.constant 0 : index
      %20 = vector.load %arg15[%c0_13, %c0_14] : memref<8x128xf32, #tpu.memory_space<vmem>>, vector<8x128xf32>
      %c0_15 = arith.constant 0 : index
      %c0_16 = arith.constant 0 : index
      %c0_17 = arith.constant 0 : index
      %21 = vector.load %arg4[%c0_15, %c0_16, %c0_17] : memref<1x8x128xf32, #tpu.memory_space<vmem>>, vector<1x8x128xf32>
      %22 = vector.shape_cast %21 : vector<1x8x128xf32> to vector<8x128xf32>
      %c0_18 = arith.constant 0 : index
      %c0_19 = arith.constant 0 : index
      %23 = vector.load %arg5[%c0_18, %c0_19] : memref<128x256xf32, #tpu.memory_space<vmem>>, vector<128x256xf32>
      %cst_20 = arith.constant dense<0.000000e+00> : vector<8x256xf32>
      %24 = tpu.matmul %20, %23, %cst_20 {dimension_numbers = #tpu.dot_dimension_numbers<[1], [0], [0], [1], [0, 0, 1, 1], [], []>} : vector<8x128xf32>, vector<128x256xf32>, vector<8x256xf32> -> vector<8x256xf32>
      %c0_21 = arith.constant 0 : index
      %c0_22 = arith.constant 0 : index
      %25 = vector.load %arg7[%c0_21, %c0_22] : memref<2x256xf32, #tpu.memory_space<vmem>>, vector<1x256xf32>
      %26 = vector.broadcast %25 : vector<1x256xf32> to vector<8x256xf32>
      %27 = arith.addf %24, %26 : vector<8x256xf32>
      %c0_23 = arith.constant 0 : index
      %c0_24 = arith.constant 0 : index
      %28 = vector.load %arg6[%c0_23, %c0_24] : memref<128x256xf32, #tpu.memory_space<vmem>>, vector<128x256xf32>
      %cst_25 = arith.constant dense<0.000000e+00> : vector<8x256xf32>
      %29 = tpu.matmul %22, %28, %cst_25 {dimension_numbers = #tpu.dot_dimension_numbers<[1], [0], [0], [1], [0, 0, 1, 1], [], []>} : vector<8x128xf32>, vector<128x256xf32>, vector<8x256xf32> -> vector<8x256xf32>
      %c1 = arith.constant 1 : index
      %c0_26 = arith.constant 0 : index
      %30 = vector.load %arg7[%c1, %c0_26] : memref<2x256xf32, #tpu.memory_space<vmem>>, vector<1x256xf32>
      %31 = vector.broadcast %30 : vector<1x256xf32> to vector<8x256xf32>
      %32 = arith.addf %29, %31 : vector<8x256xf32>
      %33 = vector.extract_strided_slice %27 {offsets = [0, 0], sizes = [8, 128], strides = [1, 1]} : vector<8x256xf32> to vector<8x128xf32>
      %34 = vector.extract_strided_slice %27 {offsets = [0, 128], sizes = [8, 128], strides = [1, 1]} : vector<8x256xf32> to vector<8x128xf32>
      %35 = vector.extract_strided_slice %32 {offsets = [0, 0], sizes = [8, 128], strides = [1, 1]} : vector<8x256xf32> to vector<8x128xf32>
      %36 = vector.extract_strided_slice %32 {offsets = [0, 128], sizes = [8, 128], strides = [1, 1]} : vector<8x256xf32> to vector<8x128xf32>
      %37 = arith.mulf %35, %33 : vector<8x128xf32>
      %c0_27 = arith.constant 0 : index
      %c0_28 = arith.constant 0 : index
      %38 = vector.load %arg8[%c0_27, %c0_28] : memref<128x256xf32, #tpu.memory_space<vmem>>, vector<128x256xf32>
      %cst_29 = arith.constant dense<0.000000e+00> : vector<8x256xf32>
      %39 = tpu.matmul %37, %38, %cst_29 {dimension_numbers = #tpu.dot_dimension_numbers<[1], [0], [0], [1], [0, 0, 1, 1], [], []>} : vector<8x128xf32>, vector<128x256xf32>, vector<8x256xf32> -> vector<8x256xf32>
      %c0_30 = arith.constant 0 : index
      %c0_31 = arith.constant 0 : index
      %40 = vector.load %arg9[%c0_30, %c0_31] : memref<1x256xf32, #tpu.memory_space<vmem>>, vector<1x256xf32>
      %41 = vector.broadcast %40 : vector<1x256xf32> to vector<8x256xf32>
      %42 = arith.addf %39, %41 : vector<8x256xf32>
      %43 = vector.extract_strided_slice %42 {offsets = [0, 0], sizes = [8, 128], strides = [1, 1]} : vector<8x256xf32> to vector<8x128xf32>
      %c0_32 = arith.constant 0 : index
      %c0_33 = arith.constant 0 : index
      %44 = vector.load %arg12[%c0_32, %c0_33] : memref<5x128xf32, #tpu.memory_space<vmem>>, vector<1x128xf32>
      %c0_34 = arith.constant 0 : index
      %c0_35 = arith.constant 0 : index
      %45 = vector.load %arg13[%c0_34, %c0_35] : memref<5x128xf32, #tpu.memory_space<vmem>>, vector<1x128xf32>
      %cst_36 = arith.constant dense<0.000000e+00> : vector<8xf32>
      %46 = vector.multi_reduction <add>, %43, %cst_36 [1] : vector<8x128xf32> to vector<8xf32>
      %47 = vector.shape_cast %46 : vector<8xf32> to vector<8x1xf32>
      %48 = arith.mulf %43, %43 : vector<8x128xf32>
      %cst_37 = arith.constant dense<0.000000e+00> : vector<8xf32>
      %49 = vector.multi_reduction <add>, %48, %cst_37 [1] : vector<8x128xf32> to vector<8xf32>
      %50 = vector.shape_cast %49 : vector<8xf32> to vector<8x1xf32>
      %cst_38 = arith.constant 1.562500e-02 : f32
      %51 = vector.broadcast %cst_38 : f32 to vector<8x1xf32>
      %52 = arith.mulf %47, %51 : vector<8x1xf32>
      %cst_39 = arith.constant 1.562500e-02 : f32
      %53 = vector.broadcast %cst_39 : f32 to vector<8x1xf32>
      %54 = arith.mulf %50, %53 : vector<8x1xf32>
      %55 = arith.mulf %52, %52 : vector<8x1xf32>
      %56 = arith.subf %54, %55 : vector<8x1xf32>
      %57 = vector.broadcast %52 : vector<8x1xf32> to vector<8x128xf32>
      %58 = arith.subf %43, %57 : vector<8x128xf32>
      %cst_40 = arith.constant 9.99999974E-6 : f32
      %59 = vector.broadcast %cst_40 : f32 to vector<8x1xf32>
      %60 = arith.addf %56, %59 : vector<8x1xf32>
      %61 = math.rsqrt %60 : vector<8x1xf32>
      %62 = vector.broadcast %61 : vector<8x1xf32> to vector<8x128xf32>
      %63 = arith.mulf %58, %62 : vector<8x128xf32>
      %64 = vector.broadcast %44 : vector<1x128xf32> to vector<8x128xf32>
      %65 = arith.mulf %63, %64 : vector<8x128xf32>
      %66 = vector.broadcast %45 : vector<1x128xf32> to vector<8x128xf32>
      %67 = arith.addf %65, %66 : vector<8x128xf32>
      %68 = arith.negf %67 : vector<8x128xf32>
      %69 = math.exp %68 : vector<8x128xf32>
      %cst_41 = arith.constant 1.000000e+00 : f32
      %70 = vector.broadcast %cst_41 : f32 to vector<8x128xf32>
      %71 = arith.addf %70, %69 : vector<8x128xf32>
      %72 = arith.divf %70, %71 : vector<8x128xf32>
      %73 = vector.extract_strided_slice %42 {offsets = [0, 128], sizes = [8, 128], strides = [1, 1]} : vector<8x256xf32> to vector<8x128xf32>
      %c1_42 = arith.constant 1 : index
      %c0_43 = arith.constant 0 : index
      %74 = vector.load %arg12[%c1_42, %c0_43] : memref<5x128xf32, #tpu.memory_space<vmem>>, vector<1x128xf32>
      %c1_44 = arith.constant 1 : index
      %c0_45 = arith.constant 0 : index
      %75 = vector.load %arg13[%c1_44, %c0_45] : memref<5x128xf32, #tpu.memory_space<vmem>>, vector<1x128xf32>
      %cst_46 = arith.constant dense<0.000000e+00> : vector<8xf32>
      %76 = vector.multi_reduction <add>, %73, %cst_46 [1] : vector<8x128xf32> to vector<8xf32>
      %77 = vector.shape_cast %76 : vector<8xf32> to vector<8x1xf32>
      %78 = arith.mulf %73, %73 : vector<8x128xf32>
      %cst_47 = arith.constant dense<0.000000e+00> : vector<8xf32>
      %79 = vector.multi_reduction <add>, %78, %cst_47 [1] : vector<8x128xf32> to vector<8xf32>
      %80 = vector.shape_cast %79 : vector<8xf32> to vector<8x1xf32>
      %cst_48 = arith.constant 1.562500e-02 : f32
      %81 = vector.broadcast %cst_48 : f32 to vector<8x1xf32>
      %82 = arith.mulf %77, %81 : vector<8x1xf32>
      %cst_49 = arith.constant 1.562500e-02 : f32
      %83 = vector.broadcast %cst_49 : f32 to vector<8x1xf32>
      %84 = arith.mulf %80, %83 : vector<8x1xf32>
      %85 = arith.mulf %82, %82 : vector<8x1xf32>
      %86 = arith.subf %84, %85 : vector<8x1xf32>
      %87 = vector.broadcast %82 : vector<8x1xf32> to vector<8x128xf32>
      %88 = arith.subf %73, %87 : vector<8x128xf32>
      %cst_50 = arith.constant 9.99999974E-6 : f32
      %89 = vector.broadcast %cst_50 : f32 to vector<8x1xf32>
      %90 = arith.addf %86, %89 : vector<8x1xf32>
      %91 = math.rsqrt %90 : vector<8x1xf32>
      %92 = vector.broadcast %91 : vector<8x1xf32> to vector<8x128xf32>
      %93 = arith.mulf %88, %92 : vector<8x128xf32>
      %94 = vector.broadcast %74 : vector<1x128xf32> to vector<8x128xf32>
      %95 = arith.mulf %93, %94 : vector<8x128xf32>
      %96 = vector.broadcast %75 : vector<1x128xf32> to vector<8x128xf32>
      %97 = arith.addf %95, %96 : vector<8x128xf32>
      %98 = arith.negf %97 : vector<8x128xf32>
      %99 = math.exp %98 : vector<8x128xf32>
      %cst_51 = arith.constant 1.000000e+00 : f32
      %100 = vector.broadcast %cst_51 : f32 to vector<8x128xf32>
      %101 = arith.addf %100, %99 : vector<8x128xf32>
      %102 = arith.divf %100, %101 : vector<8x128xf32>
      %c2 = arith.constant 2 : index
      %c0_52 = arith.constant 0 : index
      %103 = vector.load %arg12[%c2, %c0_52] : memref<5x128xf32, #tpu.memory_space<vmem>>, vector<1x128xf32>
      %c2_53 = arith.constant 2 : index
      %c0_54 = arith.constant 0 : index
      %104 = vector.load %arg13[%c2_53, %c0_54] : memref<5x128xf32, #tpu.memory_space<vmem>>, vector<1x128xf32>
      %cst_55 = arith.constant dense<0.000000e+00> : vector<8xf32>
      %105 = vector.multi_reduction <add>, %34, %cst_55 [1] : vector<8x128xf32> to vector<8xf32>
      %106 = vector.shape_cast %105 : vector<8xf32> to vector<8x1xf32>
      %107 = arith.mulf %34, %34 : vector<8x128xf32>
      %cst_56 = arith.constant dense<0.000000e+00> : vector<8xf32>
      %108 = vector.multi_reduction <add>, %107, %cst_56 [1] : vector<8x128xf32> to vector<8xf32>
      %109 = vector.shape_cast %108 : vector<8xf32> to vector<8x1xf32>
      %cst_57 = arith.constant 1.562500e-02 : f32
      %110 = vector.broadcast %cst_57 : f32 to vector<8x1xf32>
      %111 = arith.mulf %106, %110 : vector<8x1xf32>
      %cst_58 = arith.constant 1.562500e-02 : f32
      %112 = vector.broadcast %cst_58 : f32 to vector<8x1xf32>
      %113 = arith.mulf %109, %112 : vector<8x1xf32>
      %114 = arith.mulf %111, %111 : vector<8x1xf32>
      %115 = arith.subf %113, %114 : vector<8x1xf32>
      %116 = vector.broadcast %111 : vector<8x1xf32> to vector<8x128xf32>
      %117 = arith.subf %34, %116 : vector<8x128xf32>
      %cst_59 = arith.constant 9.99999974E-6 : f32
      %118 = vector.broadcast %cst_59 : f32 to vector<8x1xf32>
      %119 = arith.addf %115, %118 : vector<8x1xf32>
      %120 = math.rsqrt %119 : vector<8x1xf32>
      %121 = vector.broadcast %120 : vector<8x1xf32> to vector<8x128xf32>
      %122 = arith.mulf %117, %121 : vector<8x128xf32>
      %123 = vector.broadcast %103 : vector<1x128xf32> to vector<8x128xf32>
      %124 = arith.mulf %122, %123 : vector<8x128xf32>
      %125 = vector.broadcast %104 : vector<1x128xf32> to vector<8x128xf32>
      %126 = arith.addf %124, %125 : vector<8x128xf32>
      %c3 = arith.constant 3 : index
      %c0_60 = arith.constant 0 : index
      %127 = vector.load %arg12[%c3, %c0_60] : memref<5x128xf32, #tpu.memory_space<vmem>>, vector<1x128xf32>
      %c3_61 = arith.constant 3 : index
      %c0_62 = arith.constant 0 : index
      %128 = vector.load %arg13[%c3_61, %c0_62] : memref<5x128xf32, #tpu.memory_space<vmem>>, vector<1x128xf32>
      %cst_63 = arith.constant dense<0.000000e+00> : vector<8xf32>
      %129 = vector.multi_reduction <add>, %36, %cst_63 [1] : vector<8x128xf32> to vector<8xf32>
      %130 = vector.shape_cast %129 : vector<8xf32> to vector<8x1xf32>
      %131 = arith.mulf %36, %36 : vector<8x128xf32>
      %cst_64 = arith.constant dense<0.000000e+00> : vector<8xf32>
      %132 = vector.multi_reduction <add>, %131, %cst_64 [1] : vector<8x128xf32> to vector<8xf32>
      %133 = vector.shape_cast %132 : vector<8xf32> to vector<8x1xf32>
      %cst_65 = arith.constant 1.562500e-02 : f32
      %134 = vector.broadcast %cst_65 : f32 to vector<8x1xf32>
      %135 = arith.mulf %130, %134 : vector<8x1xf32>
      %cst_66 = arith.constant 1.562500e-02 : f32
      %136 = vector.broadcast %cst_66 : f32 to vector<8x1xf32>
      %137 = arith.mulf %133, %136 : vector<8x1xf32>
      %138 = arith.mulf %135, %135 : vector<8x1xf32>
      %139 = arith.subf %137, %138 : vector<8x1xf32>
      %140 = vector.broadcast %135 : vector<8x1xf32> to vector<8x128xf32>
      %141 = arith.subf %36, %140 : vector<8x128xf32>
      %cst_67 = arith.constant 9.99999974E-6 : f32
      %142 = vector.broadcast %cst_67 : f32 to vector<8x1xf32>
      %143 = arith.addf %139, %142 : vector<8x1xf32>
      %144 = math.rsqrt %143 : vector<8x1xf32>
      %145 = vector.broadcast %144 : vector<8x1xf32> to vector<8x128xf32>
      %146 = arith.mulf %141, %145 : vector<8x128xf32>
      %147 = vector.broadcast %127 : vector<1x128xf32> to vector<8x128xf32>
      %148 = arith.mulf %146, %147 : vector<8x128xf32>
      %149 = vector.broadcast %128 : vector<1x128xf32> to vector<8x128xf32>
      %150 = arith.addf %148, %149 : vector<8x128xf32>
      %151 = arith.mulf %72, %126 : vector<8x128xf32>
      %152 = arith.mulf %102, %150 : vector<8x128xf32>
      %153 = arith.addf %151, %152 : vector<8x128xf32>
      %c0_68 = arith.constant 0 : index
      %c0_69 = arith.constant 0 : index
      %154 = vector.load %arg10[%c0_68, %c0_69] : memref<128x128xf32, #tpu.memory_space<vmem>>, vector<128x128xf32>
      %cst_70 = arith.constant dense<0.000000e+00> : vector<8x128xf32>
      %155 = tpu.matmul %153, %154, %cst_70 {dimension_numbers = #tpu.dot_dimension_numbers<[1], [0], [0], [1], [0, 0, 1, 1], [], []>} : vector<8x128xf32>, vector<128x128xf32>, vector<8x128xf32> -> vector<8x128xf32>
      %c0_71 = arith.constant 0 : index
      %c0_72 = arith.constant 0 : index
      %156 = vector.load %arg11[%c0_71, %c0_72] : memref<1x128xf32, #tpu.memory_space<vmem>>, vector<1x128xf32>
      %157 = vector.broadcast %156 : vector<1x128xf32> to vector<8x128xf32>
      %158 = arith.addf %155, %157 : vector<8x128xf32>
      %c4 = arith.constant 4 : index
      %c0_73 = arith.constant 0 : index
      %159 = vector.load %arg12[%c4, %c0_73] : memref<5x128xf32, #tpu.memory_space<vmem>>, vector<1x128xf32>
      %c4_74 = arith.constant 4 : index
      %c0_75 = arith.constant 0 : index
      %160 = vector.load %arg13[%c4_74, %c0_75] : memref<5x128xf32, #tpu.memory_space<vmem>>, vector<1x128xf32>
      %cst_76 = arith.constant dense<0.000000e+00> : vector<8xf32>
      %161 = vector.multi_reduction <add>, %158, %cst_76 [1] : vector<8x128xf32> to vector<8xf32>
      %162 = vector.shape_cast %161 : vector<8xf32> to vector<8x1xf32>
      %163 = arith.mulf %158, %158 : vector<8x128xf32>
      %cst_77 = arith.constant dense<0.000000e+00> : vector<8xf32>
      %164 = vector.multi_reduction <add>, %163, %cst_77 [1] : vector<8x128xf32> to vector<8xf32>
      %165 = vector.shape_cast %164 : vector<8xf32> to vector<8x1xf32>
      %cst_78 = arith.constant 1.562500e-02 : f32
      %166 = vector.broadcast %cst_78 : f32 to vector<8x1xf32>
      %167 = arith.mulf %162, %166 : vector<8x1xf32>
      %cst_79 = arith.constant 1.562500e-02 : f32
      %168 = vector.broadcast %cst_79 : f32 to vector<8x1xf32>
      %169 = arith.mulf %165, %168 : vector<8x1xf32>
      %170 = arith.mulf %167, %167 : vector<8x1xf32>
      %171 = arith.subf %169, %170 : vector<8x1xf32>
      %172 = vector.broadcast %167 : vector<8x1xf32> to vector<8x128xf32>
      %173 = arith.subf %158, %172 : vector<8x128xf32>
      %cst_80 = arith.constant 9.99999974E-6 : f32
      %174 = vector.broadcast %cst_80 : f32 to vector<8x1xf32>
      %175 = arith.addf %171, %174 : vector<8x1xf32>
      %176 = math.rsqrt %175 : vector<8x1xf32>
      %177 = vector.broadcast %176 : vector<8x1xf32> to vector<8x128xf32>
      %178 = arith.mulf %173, %177 : vector<8x128xf32>
      %179 = vector.broadcast %159 : vector<1x128xf32> to vector<8x128xf32>
      %180 = arith.mulf %178, %179 : vector<8x128xf32>
      %181 = vector.broadcast %160 : vector<1x128xf32> to vector<8x128xf32>
      %182 = arith.addf %180, %181 : vector<8x128xf32>
      %cst_81 = arith.constant 0.000000e+00 : f32
      %183 = vector.broadcast %cst_81 : f32 to vector<8x128xf32>
      %184 = arith.maximumf %182, %183 : vector<8x128xf32>
      %c0_82 = arith.constant 0 : index
      %c0_83 = arith.constant 0 : index
      %c0_84 = arith.constant 0 : index
      %185 = vector.load %arg14[%c0_82, %c0_83, %c0_84] : memref<1x8x128xf32, #tpu.memory_space<vmem>>, vector<1x8x128xf32>
      %186 = vector.shape_cast %185 : vector<1x8x128xf32> to vector<8x128xf32>
      %187 = vector.shape_cast %184 : vector<8x128xf32> to vector<1x8x128xf32>
      tpu.vector_store %arg14[%c0_82, %c0_83, %c0_84], %187 {strides = array<i32>} : memref<1x8x128xf32, #tpu.memory_space<vmem>>, vector<1x8x128xf32>,
    } else {
    }
    return
  }
  func.func @transform_0(%arg0: i32, %arg1: i32) -> (i32, i32, i32) {
    %c0_i32 = arith.constant 0 : i32
    %c0_i32_0 = arith.constant 0 : i32
    return %arg0, %c0_i32, %arg1 : i32, i32, i32
  }
  func.func @transform_1(%arg0: i32, %arg1: i32) -> (i32, i32, i32) {
    %c0_i32 = arith.constant 0 : i32
    %c0_i32_0 = arith.constant 0 : i32
    return %arg0, %arg1, %c0_i32 : i32, i32, i32
  }
  func.func @transform_2(%arg0: i32, %arg1: i32) -> (i32, i32, i32) {
    %c0_i32 = arith.constant 0 : i32
    %c0_i32_0 = arith.constant 0 : i32
    %c0_i32_1 = arith.constant 0 : i32
    return %arg0, %c0_i32, %c0_i32_0 : i32, i32, i32
  }
  func.func @transform_3(%arg0: i32, %arg1: i32) -> (i32, i32) {
    %c0_i32 = arith.constant 0 : i32
    %c0_i32_0 = arith.constant 0 : i32
    %c0_i32_1 = arith.constant 0 : i32
    return %c0_i32, %c0_i32_0 : i32, i32
  }
  func.func @transform_4(%arg0: i32, %arg1: i32) -> (i32, i32) {
    %c0_i32 = arith.constant 0 : i32
    %c0_i32_0 = arith.constant 0 : i32
    %c0_i32_1 = arith.constant 0 : i32
    return %c0_i32, %c0_i32_0 : i32, i32
  }
  func.func @transform_5(%arg0: i32, %arg1: i32) -> (i32, i32) {
    %c0_i32 = arith.constant 0 : i32
    %c0_i32_0 = arith.constant 0 : i32
    %c0_i32_1 = arith.constant 0 : i32
    return %c0_i32, %c0_i32_0 : i32, i32
  }
  func.func @transform_6(%arg0: i32, %arg1: i32) -> (i32, i32) {
    %c0_i32 = arith.constant 0 : i32
    %c0_i32_0 = arith.constant 0 : i32
    %c0_i32_1 = arith.constant 0 : i32
    return %c0_i32, %c0_i32_0 : i32, i32
  }
  func.func @transform_7(%arg0: i32, %arg1: i32) -> (i32, i32) {
    %c0_i32 = arith.constant 0 : i32
    %c0_i32_0 = arith.constant 0 : i32
    %c0_i32_1 = arith.constant 0 : i32
    return %c0_i32, %c0_i32_0 : i32, i32
  }
  func.func @transform_8(%arg0: i32, %arg1: i32) -> (i32, i32) {
    %c0_i32 = arith.constant 0 : i32
    %c0_i32_0 = arith.constant 0 : i32
    %c0_i32_1 = arith.constant 0 : i32
    return %c0_i32, %c0_i32_0 : i32, i32
  }
  func.func @transform_9(%arg0: i32, %arg1: i32) -> (i32, i32) {
    %c0_i32 = arith.constant 0 : i32
    %c0_i32_0 = arith.constant 0 : i32
    %c0_i32_1 = arith.constant 0 : i32
    return %c0_i32, %c0_i32_0 : i32, i32
  }
  func.func @transform_10(%arg0: i32, %arg1: i32) -> (i32, i32) {
    %c0_i32 = arith.constant 0 : i32
    %c0_i32_0 = arith.constant 0 : i32
    %c0_i32_1 = arith.constant 0 : i32
    return %c0_i32, %c0_i32_0 : i32, i32
  }
  func.func @transform_11(%arg0: i32, %arg1: i32) -> (i32, i32) {
    %c0_i32 = arith.constant 0 : i32
    %c0_i32_0 = arith.constant 0 : i32
    %c0_i32_1 = arith.constant 0 : i32
    return %c0_i32, %c0_i32_0 : i32, i32
  }
  func.func @transform_12(%arg0: i32, %arg1: i32) -> (i32, i32, i32) {
    %c0_i32 = arith.constant 0 : i32
    %c0_i32_0 = arith.constant 0 : i32
    %c0_i32_1 = arith.constant 0 : i32
    return %arg0, %c0_i32, %c0_i32_0 : i32, i32, i32
  }
}

</mosaic_0001>

<llo_original>
// kernel: tpu_custom_call.1
$region0: #{tpu_custom_call.1}
  #allocation0 [shape = 'u32[]', space=smem, size = 0x4, offset = 0x4, fixed_abs, tag = 'smem constant byte address 0x4 - core index']
  #allocation1 [shape = 'u32[144,128]{1,0:T(1,128)}', space=vmem, size = 0x12000, scoped, tag = 'internal scratch']
  #allocation2 [shape = 'f32[8,128]{1,0:T(8,128)}', space=vmem, size = 0x1000, scoped, tag = 'scratch operand']
  %s0 = inlined_call_operand.hbm [shape: f32[2,8,256], index: 0, kind: input, shape index: {}]
  %s1 = inlined_call_operand.hbm [shape: bf16[2,256,128], index: 1, kind: input, shape index: {}]
  %s2 = inlined_call_operand.hbm [shape: f32[2,8,128], index: 2, kind: input, shape index: {}]
  %s3 = inlined_call_operand.hbm [shape: f32[128,256], index: 3, kind: input, shape index: {}]
  %s4 = inlined_call_operand.hbm [shape: f32[128,256], index: 4, kind: input, shape index: {}]
  %s5 = inlined_call_operand.hbm [shape: f32[2,256], index: 5, kind: input, shape index: {}]
  %s6 = inlined_call_operand.hbm [shape: f32[128,256], index: 6, kind: input, shape index: {}]
  %s7 = inlined_call_operand.vmem [shape: f32[1,256], index: 7, kind: input, shape index: {}]
  %s8 = inlined_call_operand.hbm [shape: f32[128,128], index: 8, kind: input, shape index: {}]
  %s9 = inlined_call_operand.vmem [shape: f32[1,128], index: 9, kind: input, shape index: {}]
  %s10 = inlined_call_operand.vmem [shape: f32[5,128], index: 10, kind: input, shape index: {}]
  %s11 = inlined_call_operand.vmem [shape: f32[5,128], index: 11, kind: input, shape index: {}]
  %s12 = inlined_call_operand.hbm [shape: f32[2,8,128], index: 12, kind: output, shape index: {}]
  %s13 = sld [smem:[#allocation0]]
  $region121: #{tpu_custom_call.1} parent=0
    _
  %s15 = ssub.s32 1, %s13
  %s16 = scalar_select 0, %s15, %s13
  $region1: #{tpu_custom_call.1} parent=0
    #allocation3 [shape = 'u8[16384]{0}', space=vmem, size = 0x4000, scoped, tag = 'input window, operand 0']
    #allocation4 [shape = 's32[2]{0}', space=sflag, size = 0x8, scoped, tag = 'scoped memory for tpu_custom_call.1']
    #allocation5 [shape = 's32[2]{0}', space=sflag, size = 0x8, scoped, tag = 'scoped memory for tpu_custom_call.1']
    #allocation6 [shape = 'u8[131072]{0}', space=vmem, size = 0x20000, scoped, tag = 'input window, operand 1']
    #allocation7 [shape = 's32[2]{0}', space=sflag, size = 0x8, scoped, tag = 'scoped memory for tpu_custom_call.1']
    #allocation8 [shape = 'u8[8192]{0}', space=vmem, size = 0x2000, scoped, tag = 'input window, operand 2']
    #allocation9 [shape = 'u8[131072]{0}', space=vmem, size = 0x20000, scoped, tag = 'input window, operand 3, single buffered']
    #allocation10 [shape = 's32[1]{0}', space=sflag, size = 0x4, scoped, tag = 'scoped memory for tpu_custom_call.1']
    #allocation11 [shape = 'u8[131072]{0}', space=vmem, size = 0x20000, scoped, tag = 'input window, operand 4, single buffered']
    #allocation12 [shape = 'u8[2048]{0}', space=vmem, size = 0x800, scoped, tag = 'input window, operand 5, single buffered']
    #allocation13 [shape = 's32[1]{0}', space=sflag, size = 0x4, scoped, tag = 'scoped memory for tpu_custom_call.1']
    #allocation14 [shape = 'u8[131072]{0}', space=vmem, size = 0x20000, scoped, tag = 'input window, operand 6, single buffered']
    #allocation15 [shape = 'u8[65536]{0}', space=vmem, size = 0x10000, scoped, tag = 'input window, operand 8, single buffered']
    #allocation16 [shape = 's32[1]{0}', space=sflag, size = 0x4, scoped, tag = 'scoped memory for tpu_custom_call.1']
    #allocation17 [shape = 'u8[8192]{0}', space=vmem, size = 0x2000, scoped, tag = 'output window, operand 0']
    %17 = vsyncpa [#allocation4], 0
    %s18 = scalar_lea.sflag [#allocation4], 1
    %19 = vsyncpa %s18, 0
    %20 = vsyncpa [#allocation7], 0
    %s21 = scalar_lea.sflag [#allocation7], 1
    %22 = vsyncpa %s21, 0
    %23 = vsyncpa [#allocation10], 0
    %24 = vsyncpa [#allocation13], 0
    %25 = vsyncpa [#allocation16], 0
    %26 = vsyncpa [#allocation5], 0
    %s27 = scalar_lea.sflag [#allocation5], 1
    %28 = vsyncpa %s27, 0
    loop: start=0, step=1, limit=4
    $region2: #{tpu_custom_call.1} parent=1 // loop_pre_header
      _
    $region3: #{tpu_custom_call.1} parent=1 // loop_header
      %s30 = sphi 0, %s34
      %p31 = scmp.ge.s32.totalorder %s30, 4
      %s37 = sphi 0, %s49
      %s38 = sphi 0, %s45
      %s39 = sphi 0, %s37
      %s40 = sphi 0, %s38
      %s41 = sphi 0, %s39
      %s42 = sphi 0, %s40
      %s54 = sphi 0, %s56
      %s57 = sphi 0, %s54
      %s58 = sphi 0, %s57
      %s74 = sphi 0, %s58
      %s82 = sphi 0, %s84
      %s85 = sphi 0, %s82
      %s86 = sphi 0, %s85
      %s102 = sphi 0, %s86
      %s108 = sphi 0, %s110
      %s111 = sphi 0, %s108
      %s112 = sphi 0, %s111
      %s128 = sphi 0, %s112
      %s132 = sphi 0, %s132
      %s134 = sphi 0, %s132
      %s135 = sphi 0, %s134
      %s149 = sphi 0, %s135
      %s153 = sphi 0, %s153
      %s155 = sphi 0, %s153
      %s156 = sphi 0, %s155
      %s170 = sphi 0, %s156
      %s174 = sphi 0, %s174
      %s176 = sphi 0, %s174
      %s177 = sphi 0, %s176
      %s191 = sphi 0, %s177
      %s195 = sphi 0, %s195
      %s197 = sphi 0, %s195
      %s198 = sphi 0, %s197
      %s212 = sphi 0, %s198
      %s216 = sphi 0, %s216
      %s218 = sphi 0, %s216
      %s219 = sphi 0, %s218
      %s233 = sphi 0, %s219
      %s237 = sphi 0, %s237
      %s239 = sphi 0, %s237
      %s240 = sphi 0, %s239
      %s254 = sphi 0, %s240
      %s258 = sphi 0, %s258
      %s260 = sphi 0, %s258
      %s261 = sphi 0, %s260
      %s275 = sphi 0, %s261
      %s279 = sphi 0, %s279
      %s281 = sphi 0, %s279
      %s282 = sphi 0, %s281
      %s296 = sphi 0, %s282
      %s300 = sphi 0, %s300
      %s302 = sphi 0, %s300
      %s303 = sphi 0, %s302
      %s317 = sphi 0, %s303
      %s323 = sphi 0, %s325
      %s326 = sphi 0, %s323
      %s327 = sphi 0, %s326
      %s343 = sphi 0, %s327
    $region4: #{tpu_custom_call.1} parent=1 // loop_header_branch
      %33 = sbr.rel (%p31) target = $region8
    $region5: #{tpu_custom_call.1} parent=1 // loop_body
      %s35 = ssub.s32 %s30, 1
      %s36 = ssub.s32 %s30, 2
      %s43 = sadd.s32 1, %s38
      %p44 = scmp.ge.s32.totalorder %s43, 1
      %s45 = scalar_select %p44, 0, %s43
      %s46 = sadd.s32 1, %s37
      %s47 = scalar_select %p44, %s46, %s37
      %p48 = scmp.ge.s32.totalorder %s47, 2
      %s49 = scalar_select %p48, 0, %s47
      %s50 = ssub.s32 %s37, %s49
      %s51 = ssub.s32 %s38, %s45
      %s52 = sor.u32 %s50, %s51
      %p53 = scmp.eq.s32.totalorder %s52, 0
      %s55 = sadd.s32 %s54, 1
      %s56 = scalar_select %p53, %s54, %s55
      %p59 = pneg %p53
      %p60 = scmp.eq.s32.totalorder %s30, 1
      %p61 = por %p59, %p60
      %p62 = scmp.ne.s32.totalorder %s54, %s57
      %p63 = scmp.eq.s32.totalorder %s30, 0
      %p64 = por %p62, %p63
      %p65 = scmp.ne.s32.totalorder %s54, %s57
      %p66 = scmp.eq.s32.totalorder %s35, 1
      %p67 = por %p65, %p66
      %p68 = scmp.ne.s32.totalorder %s57, %s58
      %p69 = scmp.eq.s32.totalorder %s35, 0
      %p70 = por %p68, %p69
      %p71 = scmp.ne.s32.totalorder %s57, %s58
      %p72 = scmp.eq.s32.totalorder %s36, 1
      %p73 = por %p71, %p72
      %p75 = scmp.ne.s32.totalorder %s58, %s74
      %p76 = scmp.eq.s32.totalorder %s36, 0
      %p77 = por %p75, %p76
      %s78 = ssub.s32 %s37, %s49
      %s79 = ssub.s32 %s38, %s45
      %s80 = sor.u32 %s78, %s79
      %p81 = scmp.eq.s32.totalorder %s80, 0
      %s83 = sadd.s32 %s82, 1
      %s84 = scalar_select %p81, %s82, %s83
      %p87 = pneg %p81
      %p88 = scmp.eq.s32.totalorder %s30, 1
      %p89 = por %p87, %p88
      %p90 = scmp.ne.s32.totalorder %s82, %s85
      %p91 = scmp.eq.s32.totalorder %s30, 0
      %p92 = por %p90, %p91
      %p93 = scmp.ne.s32.totalorder %s82, %s85
      %p94 = scmp.eq.s32.totalorder %s35, 1
      %p95 = por %p93, %p94
      %p96 = scmp.ne.s32.totalorder %s85, %s86
      %p97 = scmp.eq.s32.totalorder %s35, 0
      %p98 = por %p96, %p97
      %p99 = scmp.ne.s32.totalorder %s85, %s86
      %p100 = scmp.eq.s32.totalorder %s36, 1
      %p101 = por %p99, %p100
      %p103 = scmp.ne.s32.totalorder %s86, %s102
      %p104 = scmp.eq.s32.totalorder %s36, 0
      %p105 = por %p103, %p104
      %s106 = ssub.s32 %s37, %s49
      %p107 = scmp.eq.s32.totalorder %s106, 0
      %s109 = sadd.s32 %s108, 1
      %s110 = scalar_select %p107, %s108, %s109
      %p113 = pneg %p107
      %p114 = scmp.eq.s32.totalorder %s30, 1
      %p115 = por %p113, %p114
      %p116 = scmp.ne.s32.totalorder %s108, %s111
      %p117 = scmp.eq.s32.totalorder %s30, 0
      %p118 = por %p116, %p117
      %p119 = scmp.ne.s32.totalorder %s108, %s111
      %p120 = scmp.eq.s32.totalorder %s35, 1
      %p121 = por %p119, %p120
      %p122 = scmp.ne.s32.totalorder %s111, %s112
      %p123 = scmp.eq.s32.totalorder %s35, 0
      %p124 = por %p122, %p123
      %p125 = scmp.ne.s32.totalorder %s111, %s112
      %p126 = scmp.eq.s32.totalorder %s36, 1
      %p127 = por %p125, %p126
      %p129 = scmp.ne.s32.totalorder %s112, %s128
      %p130 = scmp.eq.s32.totalorder %s36, 0
      %p131 = por %p129, %p130
      %s133 = sadd.s32 %s132, 1
      %p136 = scmp.eq.s32.totalorder %s30, 1
      %p137 = scmp.ne.s32.totalorder %s132, %s134
      %p138 = scmp.eq.s32.totalorder %s30, 0
      %p139 = por %p137, %p138
      %p140 = scmp.ne.s32.totalorder %s132, %s134
      %p141 = scmp.eq.s32.totalorder %s35, 1
      %p142 = por %p140, %p141
      %p143 = scmp.ne.s32.totalorder %s134, %s135
      %p144 = scmp.eq.s32.totalorder %s35, 0
      %p145 = por %p143, %p144
      %p146 = scmp.ne.s32.totalorder %s134, %s135
      %p147 = scmp.eq.s32.totalorder %s36, 1
      %p148 = por %p146, %p147
      %p150 = scmp.ne.s32.totalorder %s135, %s149
      %p151 = scmp.eq.s32.totalorder %s36, 0
      %p152 = por %p150, %p151
      %s154 = sadd.s32 %s153, 1
      %p157 = scmp.eq.s32.totalorder %s30, 1
      %p158 = scmp.ne.s32.totalorder %s153, %s155
      %p159 = scmp.eq.s32.totalorder %s30, 0
      %p160 = por %p158, %p159
      %p161 = scmp.ne.s32.totalorder %s153, %s155
      %p162 = scmp.eq.s32.totalorder %s35, 1
      %p163 = por %p161, %p162
      %p164 = scmp.ne.s32.totalorder %s155, %s156
      %p165 = scmp.eq.s32.totalorder %s35, 0
      %p166 = por %p164, %p165
      %p167 = scmp.ne.s32.totalorder %s155, %s156
      %p168 = scmp.eq.s32.totalorder %s36, 1
      %p169 = por %p167, %p168
      %p171 = scmp.ne.s32.totalorder %s156, %s170
      %p172 = scmp.eq.s32.totalorder %s36, 0
      %p173 = por %p171, %p172
      %s175 = sadd.s32 %s174, 1
      %p178 = scmp.eq.s32.totalorder %s30, 1
      %p179 = scmp.ne.s32.totalorder %s174, %s176
      %p180 = scmp.eq.s32.totalorder %s30, 0
      %p181 = por %p179, %p180
      %p182 = scmp.ne.s32.totalorder %s174, %s176
      %p183 = scmp.eq.s32.totalorder %s35, 1
      %p184 = por %p182, %p183
      %p185 = scmp.ne.s32.totalorder %s176, %s177
      %p186 = scmp.eq.s32.totalorder %s35, 0
      %p187 = por %p185, %p186
      %p188 = scmp.ne.s32.totalorder %s176, %s177
      %p189 = scmp.eq.s32.totalorder %s36, 1
      %p190 = por %p188, %p189
      %p192 = scmp.ne.s32.totalorder %s177, %s191
      %p193 = scmp.eq.s32.totalorder %s36, 0
      %p194 = por %p192, %p193
      %s196 = sadd.s32 %s195, 1
      %p199 = scmp.eq.s32.totalorder %s30, 1
      %p200 = scmp.ne.s32.totalorder %s195, %s197
      %p201 = scmp.eq.s32.totalorder %s30, 0
      %p202 = por %p200, %p201
      %p203 = scmp.ne.s32.totalorder %s195, %s197
      %p204 = scmp.eq.s32.totalorder %s35, 1
      %p205 = por %p203, %p204
      %p206 = scmp.ne.s32.totalorder %s197, %s198
      %p207 = scmp.eq.s32.totalorder %s35, 0
      %p208 = por %p206, %p207
      %p209 = scmp.ne.s32.totalorder %s197, %s198
      %p210 = scmp.eq.s32.totalorder %s36, 1
      %p211 = por %p209, %p210
      %p213 = scmp.ne.s32.totalorder %s198, %s212
      %p214 = scmp.eq.s32.totalorder %s36, 0
      %p215 = por %p213, %p214
      %s217 = sadd.s32 %s216, 1
      %p220 = scmp.eq.s32.totalorder %s30, 1
      %p221 = scmp.ne.s32.totalorder %s216, %s218
      %p222 = scmp.eq.s32.totalorder %s30, 0
      %p223 = por %p221, %p222
      %p224 = scmp.ne.s32.totalorder %s216, %s218
      %p225 = scmp.eq.s32.totalorder %s35, 1
      %p226 = por %p224, %p225
      %p227 = scmp.ne.s32.totalorder %s218, %s219
      %p228 = scmp.eq.s32.totalorder %s35, 0
      %p229 = por %p227, %p228
      %p230 = scmp.ne.s32.totalorder %s218, %s219
      %p231 = scmp.eq.s32.totalorder %s36, 1
      %p232 = por %p230, %p231
      %p234 = scmp.ne.s32.totalorder %s219, %s233
      %p235 = scmp.eq.s32.totalorder %s36, 0
      %p236 = por %p234, %p235
      %s238 = sadd.s32 %s237, 1
      %p241 = scmp.eq.s32.totalorder %s30, 1
      %p242 = scmp.ne.s32.totalorder %s237, %s239
      %p243 = scmp.eq.s32.totalorder %s30, 0
      %p244 = por %p242, %p243
      %p245 = scmp.ne.s32.totalorder %s237, %s239
      %p246 = scmp.eq.s32.totalorder %s35, 1
      %p247 = por %p245, %p246
      %p248 = scmp.ne.s32.totalorder %s239, %s240
      %p249 = scmp.eq.s32.totalorder %s35, 0
      %p250 = por %p248, %p249
      %p251 = scmp.ne.s32.totalorder %s239, %s240
      %p252 = scmp.eq.s32.totalorder %s36, 1
      %p253 = por %p251, %p252
      %p255 = scmp.ne.s32.totalorder %s240, %s254
      %p256 = scmp.eq.s32.totalorder %s36, 0
      %p257 = por %p255, %p256
      %s259 = sadd.s32 %s258, 1
      %p262 = scmp.eq.s32.totalorder %s30, 1
      %p263 = scmp.ne.s32.totalorder %s258, %s260
      %p264 = scmp.eq.s32.totalorder %s30, 0
      %p265 = por %p263, %p264
      %p266 = scmp.ne.s32.totalorder %s258, %s260
      %p267 = scmp.eq.s32.totalorder %s35, 1
      %p268 = por %p266, %p267
      %p269 = scmp.ne.s32.totalorder %s260, %s261
      %p270 = scmp.eq.s32.totalorder %s35, 0
      %p271 = por %p269, %p270
      %p272 = scmp.ne.s32.totalorder %s260, %s261
      %p273 = scmp.eq.s32.totalorder %s36, 1
      %p274 = por %p272, %p273
      %p276 = scmp.ne.s32.totalorder %s261, %s275
      %p277 = scmp.eq.s32.totalorder %s36, 0
      %p278 = por %p276, %p277
      %s280 = sadd.s32 %s279, 1
      %p283 = scmp.eq.s32.totalorder %s30, 1
      %p284 = scmp.ne.s32.totalorder %s279, %s281
      %p285 = scmp.eq.s32.totalorder %s30, 0
      %p286 = por %p284, %p285
      %p287 = scmp.ne.s32.totalorder %s279, %s281
      %p288 = scmp.eq.s32.totalorder %s35, 1
      %p289 = por %p287, %p288
      %p290 = scmp.ne.s32.totalorder %s281, %s282
      %p291 = scmp.eq.s32.totalorder %s35, 0
      %p292 = por %p290, %p291
      %p293 = scmp.ne.s32.totalorder %s281, %s282
      %p294 = scmp.eq.s32.totalorder %s36, 1
      %p295 = por %p293, %p294
      %p297 = scmp.ne.s32.totalorder %s282, %s296
      %p298 = scmp.eq.s32.totalorder %s36, 0
      %p299 = por %p297, %p298
      %s301 = sadd.s32 %s300, 1
      %p304 = scmp.eq.s32.totalorder %s30, 1
      %p305 = scmp.ne.s32.totalorder %s300, %s302
      %p306 = scmp.eq.s32.totalorder %s30, 0
      %p307 = por %p305, %p306
      %p308 = scmp.ne.s32.totalorder %s300, %s302
      %p309 = scmp.eq.s32.totalorder %s35, 1
      %p310 = por %p308, %p309
      %p311 = scmp.ne.s32.totalorder %s302, %s303
      %p312 = scmp.eq.s32.totalorder %s35, 0
      %p313 = por %p311, %p312
      %p314 = scmp.ne.s32.totalorder %s302, %s303
      %p315 = scmp.eq.s32.totalorder %s36, 1
      %p316 = por %p314, %p315
      %p318 = scmp.ne.s32.totalorder %s303, %s317
      %p319 = scmp.eq.s32.totalorder %s36, 0
      %p320 = por %p318, %p319
      %s321 = ssub.s32 %s37, %s49
      %p322 = scmp.eq.s32.totalorder %s321, 0
      %s324 = sadd.s32 %s323, 1
      %s325 = scalar_select %p322, %s323, %s324
      %p328 = pneg %p322
      %p329 = scmp.eq.s32.totalorder %s30, 1
      %p330 = por %p328, %p329
      %p331 = scmp.ne.s32.totalorder %s323, %s326
      %p332 = scmp.eq.s32.totalorder %s30, 0
      %p333 = por %p331, %p332
      %p334 = scmp.ne.s32.totalorder %s323, %s326
      %p335 = scmp.eq.s32.totalorder %s35, 1
      %p336 = por %p334, %p335
      %p337 = scmp.ne.s32.totalorder %s326, %s327
      %p338 = scmp.eq.s32.totalorder %s35, 0
      %p339 = por %p337, %p338
      %p340 = scmp.ne.s32.totalorder %s326, %s327
      %p341 = scmp.eq.s32.totalorder %s36, 1
      %p342 = por %p340, %p341
      %p344 = scmp.ne.s32.totalorder %s327, %s343
      %p345 = scmp.eq.s32.totalorder %s36, 0
      %p346 = por %p344, %p345
      %p347 = scmp.le.s32.totalorder 1, %s30
      %p348 = scmp.lt.s32.totalorder %s30, 3
      %p349 = pnand %p347, %p348
      %p350 = pneg %p349
      // Predicated region
      $region9: #{tpu_custom_call.1} parent=5 // pred_check
        _
      $region10: #{tpu_custom_call.1} parent=5 // pred_check_branch
        %352 = sbr.rel (%p349) target = $region12
      $region11: #{tpu_custom_call.1} parent=5 // pred_region
        %s353 = ssub.s32 %s30, 1
        // Predicated region
        $region13: #{tpu_custom_call.1} parent=11 // pred_check
          %p354 = pneg %p145
        $region14: #{tpu_custom_call.1} parent=11 // pred_check_branch
          %356 = sbr.rel (%p354) target = $region16
        $region15: #{tpu_custom_call.1} parent=11 // pred_region
          %s358 = ssub.s32 4096, 4096
          %359 = vsyncadd [#allocation10], %s358
          %s360 = sshll.u32 [#allocation9], 4
          %s361 = int_to_ptr.vmem [resolvable:$true] %s360
          %366 = dma.hbm_to_vmem [thread:$0]  %s3, 4096, %s361, [#allocation10], 256, 256, 16
        $region16: #{tpu_custom_call.1} parent=11 // pred_fallthru
          _
        // Predicated region
        $region17: #{tpu_custom_call.1} parent=11 // pred_check
          %p367 = pneg %p166
        $region18: #{tpu_custom_call.1} parent=11 // pred_check_branch
          %369 = sbr.rel (%p367) target = $region20
        $region19: #{tpu_custom_call.1} parent=11 // pred_region
          %s371 = ssub.s32 4096, 4096
          %372 = vsyncadd [#allocation10], %s371
          %s373 = sshll.u32 [#allocation11], 4
          %s374 = int_to_ptr.vmem [resolvable:$true] %s373
          %379 = dma.hbm_to_vmem [thread:$0]  %s4, 4096, %s374, [#allocation10], 256, 256, 16
        $region20: #{tpu_custom_call.1} parent=11 // pred_fallthru
          _
        // Predicated region
        $region21: #{tpu_custom_call.1} parent=11 // pred_check
          %p380 = pneg %p187
        $region22: #{tpu_custom_call.1} parent=11 // pred_check_branch
          %382 = sbr.rel (%p380) target = $region24
        $region23: #{tpu_custom_call.1} parent=11 // pred_region
          %s384 = ssub.s32 64, 64
          %385 = vsyncadd [#allocation13], %s384
          %s387 = sshll.u32 [#allocation12], 4
          %s388 = int_to_ptr.vmem [resolvable:$true] %s387
          %390 = dma.hbm_to_vmem [thread:$0]  %s5, 64, %s388, [#allocation13]
        $region24: #{tpu_custom_call.1} parent=11 // pred_fallthru
          _
        // Predicated region
        $region25: #{tpu_custom_call.1} parent=11 // pred_check
          %p391 = pneg %p208
        $region26: #{tpu_custom_call.1} parent=11 // pred_check_branch
          %393 = sbr.rel (%p391) target = $region28
        $region27: #{tpu_custom_call.1} parent=11 // pred_region
          %s395 = ssub.s32 4096, 4096
          %396 = vsyncadd [#allocation13], %s395
          %s397 = sshll.u32 [#allocation14], 4
          %s398 = int_to_ptr.vmem [resolvable:$true] %s397
          %403 = dma.hbm_to_vmem [thread:$0]  %s6, 4096, %s398, [#allocation13], 256, 256, 16
        $region28: #{tpu_custom_call.1} parent=11 // pred_fallthru
          _
        // Predicated region
        $region29: #{tpu_custom_call.1} parent=11 // pred_check
          %p404 = pneg %p229
        $region30: #{tpu_custom_call.1} parent=11 // pred_check_branch
          %406 = sbr.rel (%p404) target = $region32
        $region31: #{tpu_custom_call.1} parent=11 // pred_region
          _
        $region32: #{tpu_custom_call.1} parent=11 // pred_fallthru
          _
        // Predicated region
        $region33: #{tpu_custom_call.1} parent=11 // pred_check
          %p407 = pneg %p250
        $region34: #{tpu_custom_call.1} parent=11 // pred_check_branch
          %409 = sbr.rel (%p407) target = $region36
        $region35: #{tpu_custom_call.1} parent=11 // pred_region
          %s411 = ssub.s32 2048, 2048
          %412 = vsyncadd [#allocation16], %s411
          %s413 = sshll.u32 [#allocation15], 4
          %s414 = int_to_ptr.vmem [resolvable:$true] %s413
          %419 = dma.hbm_to_vmem [thread:$0]  %s8, 2048, %s414, [#allocation16], 128, 128, 8
        $region36: #{tpu_custom_call.1} parent=11 // pred_fallthru
          _
        // Predicated region
        $region37: #{tpu_custom_call.1} parent=11 // pred_check
          %p420 = pneg %p271
        $region38: #{tpu_custom_call.1} parent=11 // pred_check_branch
          %422 = sbr.rel (%p420) target = $region40
        $region39: #{tpu_custom_call.1} parent=11 // pred_region
          _
        $region40: #{tpu_custom_call.1} parent=11 // pred_fallthru
          _
        // Predicated region
        $region41: #{tpu_custom_call.1} parent=11 // pred_check
          %p423 = pneg %p292
        $region42: #{tpu_custom_call.1} parent=11 // pred_check_branch
          %425 = sbr.rel (%p423) target = $region44
        $region43: #{tpu_custom_call.1} parent=11 // pred_region
          _
        $region44: #{tpu_custom_call.1} parent=11 // pred_fallthru
          _
        // Predicated region
        $region45: #{tpu_custom_call.1} parent=11 // pred_check
          %p426 = pneg %p313
        $region46: #{tpu_custom_call.1} parent=11 // pred_check_branch
          %428 = sbr.rel (%p426) target = $region48
        $region47: #{tpu_custom_call.1} parent=11 // pred_region
          _
        $region48: #{tpu_custom_call.1} parent=11 // pred_fallthru
          _
      $region12: #{tpu_custom_call.1} parent=5 // pred_fallthru
        _
      %p429 = scmp.lt.s32.totalorder %s30, 2
      // Predicated region
      $region49: #{tpu_custom_call.1} parent=5 // pred_check
        %p430 = pneg %p429
      $region50: #{tpu_custom_call.1} parent=5 // pred_check_branch
        %432 = sbr.rel (%p430) target = $region52
      $region51: #{tpu_custom_call.1} parent=5 // pred_region
        // Predicated region
        $region53: #{tpu_custom_call.1} parent=51 // pred_check
          %p433 = pneg %p64
        $region54: #{tpu_custom_call.1} parent=51 // pred_check_branch
          %435 = sbr.rel (%p433) target = $region56
        $region55: #{tpu_custom_call.1} parent=51 // pred_region
          %s436 = sand.u32 %s54, 1
          %s437 = scalar_lea.sflag [#allocation4], %s436
          %s438 = sand.u32 %s54, 1
          %s439 = smul.addr %s438, 16
          %s440 = scalar_lea.vmem [#allocation3], %s439
          %s441 = smul.u32 2, %s38
          %s443 = ssub.s32 256, 256
          %444 = vsyncadd %s437, %s443
          %s445 = smul.addr %s37, 2
          %s446 = sadd.s32 %s441, %s445
          %s447 = smul.addr %s446, 128
          %s448 = scalar_lea.hbm %s0, %s447
          %s450 = sshll.u32 %s440, 4
          %s451 = int_to_ptr.vmem [resolvable:$true] %s450
          %453 = dma.hbm_to_vmem [thread:$0]  %s448, 256, %s451, %s437
        $region56: #{tpu_custom_call.1} parent=51 // pred_fallthru
          _
        // Predicated region
        $region57: #{tpu_custom_call.1} parent=51 // pred_check
          %p454 = pneg %p92
        $region58: #{tpu_custom_call.1} parent=51 // pred_check_branch
          %456 = sbr.rel (%p454) target = $region60
        $region59: #{tpu_custom_call.1} parent=51 // pred_region
          %s457 = sand.u32 %s30, 1
          %s458 = scalar_lea.sflag [#allocation7], %s457
          %s459 = sand.u32 %s82, 1
          %s460 = smul.addr %s459, 128
          %s461 = scalar_lea.vmem [#allocation6], %s460
          %s462 = smul.u32 32, %s38
          %s464 = ssub.s32 2048, 2048
          %465 = vsyncadd %s458, %s464
          %s466 = smul.addr %s37, 32
          %s467 = sadd.s32 %s462, %s466
          %s468 = smul.addr %s467, 64
          %s469 = scalar_lea.hbm %s1, %s468
          %s470 = sshll.u32 %s461, 4
          %s471 = int_to_ptr.vmem [resolvable:$true] %s470
          %476 = dma.hbm_to_vmem [thread:$0]  %s469, 2048, %s471, %s458, 64, 64, 4
        $region60: #{tpu_custom_call.1} parent=51 // pred_fallthru
          _
        // Predicated region
        $region61: #{tpu_custom_call.1} parent=51 // pred_check
          %p477 = pneg %p118
        $region62: #{tpu_custom_call.1} parent=51 // pred_check_branch
          %479 = sbr.rel (%p477) target = $region64
        $region63: #{tpu_custom_call.1} parent=51 // pred_region
          %s480 = sand.u32 %s30, 1
          %s481 = scalar_lea.sflag [#allocation7], %s480
          %s482 = sand.u32 %s108, 1
          %s483 = smul.addr %s482, 8
          %s484 = scalar_lea.vmem [#allocation8], %s483
          %s486 = ssub.s32 128, 128
          %487 = vsyncadd %s481, %s486
          %s488 = smul.addr %s37, 128
          %s489 = scalar_lea.hbm %s2, %s488
          %s491 = sshll.u32 %s484, 4
          %s492 = int_to_ptr.vmem [resolvable:$true] %s491
          %494 = dma.hbm_to_vmem [thread:$0]  %s489, 128, %s492, %s481
        $region64: #{tpu_custom_call.1} parent=51 // pred_fallthru
          _
      $region52: #{tpu_custom_call.1} parent=5 // pred_fallthru
        _
      %p495 = scmp.le.s32.totalorder 1, %s30
      %p496 = scmp.lt.s32.totalorder %s30, 3
      %p497 = pnand %p495, %p496
      %p498 = pneg %p497
      // Predicated region
      $region65: #{tpu_custom_call.1} parent=5 // pred_check
        _
      $region66: #{tpu_custom_call.1} parent=5 // pred_check_branch
        %500 = sbr.rel (%p497) target = $region68
      $region67: #{tpu_custom_call.1} parent=5 // pred_region
        %s501 = ssub.s32 %s30, 1
        %s502 = sand.u32 %s57, 1
        %s503 = scalar_lea.sflag [#allocation4], %s502
        %s504 = sand.u32 %s57, 1
        %s505 = smul.addr %s504, 16
        %s506 = scalar_lea.vmem [#allocation3], %s505
        // Predicated region
        $region69: #{tpu_custom_call.1} parent=67 // pred_check
          %p507 = pneg %p70
        $region70: #{tpu_custom_call.1} parent=67 // pred_check_branch
          %509 = sbr.rel (%p507) target = $region72
        $region71: #{tpu_custom_call.1} parent=67 // pred_region
          %510 = dma.done %s503, 256
        $region72: #{tpu_custom_call.1} parent=67 // pred_fallthru
          _
        %s511 = sand.u32 %s35, 1
        %s512 = scalar_lea.sflag [#allocation7], %s511
        %s513 = sand.u32 %s85, 1
        %s514 = smul.addr %s513, 128
        %s515 = scalar_lea.vmem [#allocation6], %s514
        // Predicated region
        $region73: #{tpu_custom_call.1} parent=67 // pred_check
          %p516 = pneg %p98
        $region74: #{tpu_custom_call.1} parent=67 // pred_check_branch
          %518 = sbr.rel (%p516) target = $region76
        $region75: #{tpu_custom_call.1} parent=67 // pred_region
          %519 = dma.done %s512, 2048
        $region76: #{tpu_custom_call.1} parent=67 // pred_fallthru
          _
        %s520 = sand.u32 %s35, 1
        %s521 = scalar_lea.sflag [#allocation7], %s520
        %s522 = sand.u32 %s111, 1
        %s523 = smul.addr %s522, 8
        %s524 = scalar_lea.vmem [#allocation8], %s523
        // Predicated region
        $region77: #{tpu_custom_call.1} parent=67 // pred_check
          %p525 = pneg %p124
        $region78: #{tpu_custom_call.1} parent=67 // pred_check_branch
          %527 = sbr.rel (%p525) target = $region80
        $region79: #{tpu_custom_call.1} parent=67 // pred_region
          %528 = dma.done %s521, 128
        $region80: #{tpu_custom_call.1} parent=67 // pred_fallthru
          _
        // Predicated region
        $region81: #{tpu_custom_call.1} parent=67 // pred_check
          %p529 = pneg %p145
        $region82: #{tpu_custom_call.1} parent=67 // pred_check_branch
          %531 = sbr.rel (%p529) target = $region84
        $region83: #{tpu_custom_call.1} parent=67 // pred_region
          %532 = dma.done [#allocation10], 4096
        $region84: #{tpu_custom_call.1} parent=67 // pred_fallthru
          _
        // Predicated region
        $region85: #{tpu_custom_call.1} parent=67 // pred_check
          %p533 = pneg %p166
        $region86: #{tpu_custom_call.1} parent=67 // pred_check_branch
          %535 = sbr.rel (%p533) target = $region88
        $region87: #{tpu_custom_call.1} parent=67 // pred_region
          %536 = dma.done [#allocation10], 4096
        $region88: #{tpu_custom_call.1} parent=67 // pred_fallthru
          _
        // Predicated region
        $region89: #{tpu_custom_call.1} parent=67 // pred_check
          %p537 = pneg %p187
        $region90: #{tpu_custom_call.1} parent=67 // pred_check_branch
          %539 = sbr.rel (%p537) target = $region92
        $region91: #{tpu_custom_call.1} parent=67 // pred_region
          %540 = dma.done [#allocation13], 64
        $region92: #{tpu_custom_call.1} parent=67 // pred_fallthru
          _
        // Predicated region
        $region93: #{tpu_custom_call.1} parent=67 // pred_check
          %p541 = pneg %p208
        $region94: #{tpu_custom_call.1} parent=67 // pred_check_branch
          %543 = sbr.rel (%p541) target = $region96
        $region95: #{tpu_custom_call.1} parent=67 // pred_region
          %544 = dma.done [#allocation13], 4096
        $region96: #{tpu_custom_call.1} parent=67 // pred_fallthru
          _
        // Predicated region
        $region97: #{tpu_custom_call.1} parent=67 // pred_check
          %p545 = pneg %p250
        $region98: #{tpu_custom_call.1} parent=67 // pred_check_branch
          %547 = sbr.rel (%p545) target = $region100
        $region99: #{tpu_custom_call.1} parent=67 // pred_region
          %548 = dma.done [#allocation16], 2048
        $region100: #{tpu_custom_call.1} parent=67 // pred_fallthru
          _
        %s549 = sand.u32 %s57, 1
        %s550 = scalar_lea.sflag [#allocation4], %s549
        %s551 = sand.u32 %s57, 1
        %s552 = smul.addr %s551, 16
        %s553 = scalar_lea.vmem [#allocation3], %s552
        %p554 = pneg %p70
        %p555 = pneg %p67
        %s556 = sand.u32 %s35, 1
        %s557 = scalar_lea.sflag [#allocation7], %s556
        %s558 = sand.u32 %s85, 1
        %s559 = smul.addr %s558, 128
        %s560 = scalar_lea.vmem [#allocation6], %s559
        %p561 = pneg %p98
        %p562 = pneg %p95
        %s563 = sand.u32 %s35, 1
        %s564 = scalar_lea.sflag [#allocation7], %s563
        %s565 = sand.u32 %s111, 1
        %s566 = smul.addr %s565, 8
        %s567 = scalar_lea.vmem [#allocation8], %s566
        %p568 = pneg %p124
        %p569 = pneg %p121
        %p570 = pneg %p145
        %p571 = pneg %p142
        %p572 = pneg %p166
        %p573 = pneg %p163
        %p574 = pneg %p187
        %p575 = pneg %p184
        %p576 = pneg %p208
        %p577 = pneg %p205
        %p578 = pneg %p229
        %p579 = pneg %p226
        %p580 = pneg %p250
        %p581 = pneg %p247
        %p582 = pneg %p271
        %p583 = pneg %p268
        %p584 = pneg %p292
        %p585 = pneg %p289
        %p586 = pneg %p313
        %p587 = pneg %p310
        %p588 = pneg %p339
        %p589 = pneg %p336
        %s590 = sand.u32 %s326, 1
        %s591 = scalar_lea.sflag [#allocation5], %s590
        %s592 = sand.u32 %s326, 1
        %s593 = smul.addr %s592, 8
        %s594 = scalar_lea.vmem [#allocation17], %s593
        %s595 = smul.u32 2, %s40
        %s596 = smul.u32 32, %s40
        %p598 = scmp.eq.s32.totalorder %s40, 0
        // Predicated region
        $region101: #{tpu_custom_call.1} parent=67 // pred_check
          %p599 = pneg %p598
        $region102: #{tpu_custom_call.1} parent=67 // pred_check_branch
          %601 = sbr.rel (%p599) target = $region104
        $region103: #{tpu_custom_call.1} parent=67 // pred_region
          %602 = vst [vmem:[#allocation2] sm:$0xff] 0.0
        $region104: #{tpu_custom_call.1} parent=67 // pred_fallthru
          _
        %v603 = vld [vmem:[%s506] sm:$0xff]
        %v604 = vld [vmem:[%s506 + $0x8] sm:$0xff]
        %v605 = vxor.u32 %v603, 2147483648
        %v606 = vxor.u32 %v604, 2147483648
        %v607 = vmul.f32 %v605, 1.442695
        %v608 = vpow.pop %v607
        %v609 = vmul.f32 %v606, 1.442695
        %v610 = vpow.pop %v609
        %v611 = vadd.f32 %v608, 1.0
        %v612 = vadd.f32 %v610, 1.0
        %v613 = vrcp.pop %v611
        %v614 = vmul.f32 1.0, %v613
        %v615 = vrcp.pop %v612
        %v616 = vmul.f32 1.0, %v615
        %v617 = vpack.c.bf16 %v614, %v614
        %v618 = vpack.c.bf16 %v616, %v616
        %v619 = vld [vmem:[#allocation2] sm:$0xff]
        %v620 = vld [vmem:[%s515] sm:$0xf]
        %v621 = vld [vmem:[%s515 + $0x4] sm:$0xf]
        %v622 = vld [vmem:[%s515 + $0x8] sm:$0xf]
        %v623 = vld [vmem:[%s515 + $0xc] sm:$0xf]
        %v624 = vld [vmem:[%s515 + $0x10] sm:$0xf]
        %v625 = vld [vmem:[%s515 + $0x14] sm:$0xf]
        %v626 = vld [vmem:[%s515 + $0x18] sm:$0xf]
        %v627 = vld [vmem:[%s515 + $0x1c] sm:$0xf]
        %v628 = vld [vmem:[%s515 + $0x20] sm:$0xf]
        %v629 = vld [vmem:[%s515 + $0x24] sm:$0xf]
        %v630 = vld [vmem:[%s515 + $0x28] sm:$0xf]
        %v631 = vld [vmem:[%s515 + $0x2c] sm:$0xf]
        %v632 = vld [vmem:[%s515 + $0x30] sm:$0xf]
        %v633 = vld [vmem:[%s515 + $0x34] sm:$0xf]
        %v634 = vld [vmem:[%s515 + $0x38] sm:$0xf]
        %v635 = vld [vmem:[%s515 + $0x3c] sm:$0xf]
        %v636 = vld [vmem:[%s515 + $0x40] sm:$0xf]
        %v637 = vld [vmem:[%s515 + $0x44] sm:$0xf]
        %v638 = vld [vmem:[%s515 + $0x48] sm:$0xf]
        %v639 = vld [vmem:[%s515 + $0x4c] sm:$0xf]
        %v640 = vld [vmem:[%s515 + $0x50] sm:$0xf]
        %v641 = vld [vmem:[%s515 + $0x54] sm:$0xf]
        %v642 = vld [vmem:[%s515 + $0x58] sm:$0xf]
        %v643 = vld [vmem:[%s515 + $0x5c] sm:$0xf]
        %v644 = vld [vmem:[%s515 + $0x60] sm:$0xf]
        %v645 = vld [vmem:[%s515 + $0x64] sm:$0xf]
        %v646 = vld [vmem:[%s515 + $0x68] sm:$0xf]
        %v647 = vld [vmem:[%s515 + $0x6c] sm:$0xf]
        %v648 = vld [vmem:[%s515 + $0x70] sm:$0xf]
        %v649 = vld [vmem:[%s515 + $0x74] sm:$0xf]
        %v650 = vld [vmem:[%s515 + $0x78] sm:$0xf]
        %v651 = vld [vmem:[%s515 + $0x7c] sm:$0xf]
        %v684 = vunpack.c.l.b16 %v620
        %v685 = vunpack.c.l.b16 %v621
        %v686 = vunpack.c.l.b16 %v622
        %v687 = vunpack.c.l.b16 %v623
        %v688 = vunpack.c.l.b16 %v624
        %v689 = vunpack.c.l.b16 %v625
        %v690 = vunpack.c.l.b16 %v626
        %v691 = vunpack.c.l.b16 %v627
        %v692 = vunpack.c.l.b16 %v628
        %v693 = vunpack.c.l.b16 %v629
        %v694 = vunpack.c.l.b16 %v630
        %v695 = vunpack.c.l.b16 %v631
        %v696 = vunpack.c.l.b16 %v632
        %v697 = vunpack.c.l.b16 %v633
        %v698 = vunpack.c.l.b16 %v634
        %v699 = vunpack.c.l.b16 %v635
        %v700 = vunpack.c.l.b16 %v636
        %v701 = vunpack.c.l.b16 %v637
        %v702 = vunpack.c.l.b16 %v638
        %v703 = vunpack.c.l.b16 %v639
        %v704 = vunpack.c.l.b16 %v640
        %v705 = vunpack.c.l.b16 %v641
        %v706 = vunpack.c.l.b16 %v642
        %v707 = vunpack.c.l.b16 %v643
        %v708 = vunpack.c.l.b16 %v644
        %v709 = vunpack.c.l.b16 %v645
        %v710 = vunpack.c.l.b16 %v646
        %v711 = vunpack.c.l.b16 %v647
        %v712 = vunpack.c.l.b16 %v648
        %v713 = vunpack.c.l.b16 %v649
        %v714 = vunpack.c.l.b16 %v650
        %v715 = vunpack.c.l.b16 %v651
        %v716 = vpack.c.b16 %v685, %v684
        %v717 = vpack.c.b16 %v687, %v686
        %v718 = vpack.c.b16 %v689, %v688
        %v719 = vpack.c.b16 %v691, %v690
        %v720 = vpack.c.b16 %v693, %v692
        %v721 = vpack.c.b16 %v695, %v694
        %v722 = vpack.c.b16 %v697, %v696
        %v723 = vpack.c.b16 %v699, %v698
        %v724 = vpack.c.b16 %v701, %v700
        %v725 = vpack.c.b16 %v703, %v702
        %v726 = vpack.c.b16 %v705, %v704
        %v727 = vpack.c.b16 %v707, %v706
        %v728 = vpack.c.b16 %v709, %v708
        %v729 = vpack.c.b16 %v711, %v710
        %v730 = vpack.c.b16 %v713, %v712
        %v731 = vpack.c.b16 %v715, %v714
        %748 = vmatprep.subr.bf16.mxu0 0
        %749 = vmatpush1.bf16.msra.mxu0 %v716
        %750 = vmatprep.subr.bf16.mxu0 0
        %751 = vmatpush1.bf16.msra.mxu0 %v717
        %752 = vmatprep.subr.bf16.mxu0 0
        %753 = vmatpush1.bf16.msra.mxu0 %v718
        %754 = vmatprep.subr.bf16.mxu0 0
        %755 = vmatpush1.bf16.msra.mxu0 %v719
        %756 = vmatprep.subr.bf16.mxu0 0
        %757 = vmatpush1.bf16.msra.mxu0 %v720
        %758 = vmatprep.subr.bf16.mxu0 0
        %759 = vmatpush1.bf16.msra.mxu0 %v721
        %760 = vmatprep.subr.bf16.mxu0 0
        %761 = vmatpush1.bf16.msra.mxu0 %v722
        %762 = vmatprep.subr.bf16.mxu0 0
        %763 = vmatpush1.bf16.msra.mxu0 %v723
        %764 = vmatprep.subr.bf16.mxu0 0
        %765 = vmatpush1.bf16.msra.mxu0 %v724
        %766 = vmatprep.subr.bf16.mxu0 0
        %767 = vmatpush1.bf16.msra.mxu0 %v725
        %768 = vmatprep.subr.bf16.mxu0 0
        %769 = vmatpush1.bf16.msra.mxu0 %v726
        %770 = vmatprep.subr.bf16.mxu0 0
        %771 = vmatpush1.bf16.msra.mxu0 %v727
        %772 = vmatprep.subr.bf16.mxu0 0
        %773 = vmatpush1.bf16.msra.mxu0 %v728
        %774 = vmatprep.subr.bf16.mxu0 0
        %775 = vmatpush1.bf16.msra.mxu0 %v729
        %776 = vmatprep.subr.bf16.mxu0 0
        %777 = vmatpush1.bf16.msra.mxu0 %v730
        %778 = vmatprep.subr.bf16.mxu0 0
        %779 = vmatpush1.bf16.msra.mxu0 %v731
        %780 = vmatprep.mubr.bf16.mxu0 %v618
        %781 = vmatmul.mubr.bf16.gmra.mrb[0].mxu0 %v617
        %v782 = vpop.f32.mrb[0].mxu0
        %v783 = vadd.f32 0.0, %v782
        %v784 = vpop.f32.mrb[0].mxu0
        %v785 = vpop.f32.mrb[0].mxu0
        %v786 = vpop.f32.mrb[0].mxu0
        %787 = vdwg.mxu0
        %v788 = vadd.f32 %v619, %v783
        %789 = vst [vmem:[#allocation2] sm:$0xff] %v788
        // Predicated region
        $region105: #{tpu_custom_call.1} parent=67 // pred_check
          %p790 = pneg %p598
        $region106: #{tpu_custom_call.1} parent=67 // pred_check_branch
          %792 = sbr.rel (%p790) target = $region108
        $region107: #{tpu_custom_call.1} parent=67 // pred_region
          %v793 = vld [vmem:[#allocation2] sm:$0xff]
          %v794 = vld [vmem:[%s524] sm:$0xff]
          %v795 = vld [vmem:[#allocation9] sm:$0xff]
          %v796 = vld [vmem:[#allocation9 + $0x8] sm:$0xff]
          %v797 = vld [vmem:[#allocation9 + $0x10] sm:$0xff]
          %v798 = vld [vmem:[#allocation9 + $0x18] sm:$0xff]
          %v799 = vld [vmem:[#allocation9 + $0x20] sm:$0xff]
          %v800 = vld [vmem:[#allocation9 + $0x28] sm:$0xff]
          %v801 = vld [vmem:[#allocation9 + $0x30] sm:$0xff]
          %v802 = vld [vmem:[#allocation9 + $0x38] sm:$0xff]
          %v803 = vld [vmem:[#allocation9 + $0x40] sm:$0xff]
          %v804 = vld [vmem:[#allocation9 + $0x48] sm:$0xff]
          %v805 = vld [vmem:[#allocation9 + $0x50] sm:$0xff]
          %v806 = vld [vmem:[#allocation9 + $0x58] sm:$0xff]
          %v807 = vld [vmem:[#allocation9 + $0x60] sm:$0xff]
          %v808 = vld [vmem:[#allocation9 + $0x68] sm:$0xff]
          %v809 = vld [vmem:[#allocation9 + $0x70] sm:$0xff]
          %v810 = vld [vmem:[#allocation9 + $0x78] sm:$0xff]
          %v811 = vld [vmem:[#allocation9 + $0x80] sm:$0xff]
          %v812 = vld [vmem:[#allocation9 + $0x88] sm:$0xff]
          %v813 = vld [vmem:[#allocation9 + $0x90] sm:$0xff]
          %v814 = vld [vmem:[#allocation9 + $0x98] sm:$0xff]
          %v815 = vld [vmem:[#allocation9 + $0xa0] sm:$0xff]
          %v816 = vld [vmem:[#allocation9 + $0xa8] sm:$0xff]
          %v817 = vld [vmem:[#allocation9 + $0xb0] sm:$0xff]
          %v818 = vld [vmem:[#allocation9 + $0xb8] sm:$0xff]
          %v819 = vld [vmem:[#allocation9 + $0xc0] sm:$0xff]
          %v820 = vld [vmem:[#allocation9 + $0xc8] sm:$0xff]
          %v821 = vld [vmem:[#allocation9 + $0xd0] sm:$0xff]
          %v822 = vld [vmem:[#allocation9 + $0xd8] sm:$0xff]
          %v823 = vld [vmem:[#allocation9 + $0xe0] sm:$0xff]
          %v824 = vld [vmem:[#allocation9 + $0xe8] sm:$0xff]
          %v825 = vld [vmem:[#allocation9 + $0xf0] sm:$0xff]
          %v826 = vld [vmem:[#allocation9 + $0xf8] sm:$0xff]
          %v827 = vld [vmem:[#allocation12] ss:$2 sm:$0x3]
          %v829 = vlaneseq
          %v830 = vshrl.u32 %v829, 7
          %v831 = vsub.s32 0, %v830
          %v832 = vrot.slane %v827, %v831
          %v833 = vlaneseq
          %v834 = vshrl.u32 %v833, 7
          %v835 = vsub.s32 1, %v834
          %v836 = vrot.slane %v827, %v835
          %839 = vmatprep.subr.mxu0 %v796
          %840 = vmatpush1.msra.mxu0 %v795
          %841 = vmatprep.subr.mxu0 %v798
          %842 = vmatpush1.msra.mxu0 %v797
          %843 = vmatprep.subr.mxu0 %v800
          %844 = vmatpush1.msra.mxu0 %v799
          %845 = vmatprep.subr.mxu0 %v802
          %846 = vmatpush1.msra.mxu0 %v801
          %847 = vmatprep.subr.mxu0 %v804
          %848 = vmatpush1.msra.mxu0 %v803
          %849 = vmatprep.subr.mxu0 %v806
          %850 = vmatpush1.msra.mxu0 %v805
          %851 = vmatprep.subr.mxu0 %v808
          %852 = vmatpush1.msra.mxu0 %v807
          %853 = vmatprep.subr.mxu0 %v810
          %854 = vmatpush1.msra.mxu0 %v809
          %855 = vmatprep.subr.mxu0 %v812
          %856 = vmatpush1.msra.mxu0 %v811
          %857 = vmatprep.subr.mxu0 %v814
          %858 = vmatpush1.msra.mxu0 %v813
          %859 = vmatprep.subr.mxu0 %v816
          %860 = vmatpush1.msra.mxu0 %v815
          %861 = vmatprep.subr.mxu0 %v818
          %862 = vmatpush1.msra.mxu0 %v817
          %863 = vmatprep.subr.mxu0 %v820
          %864 = vmatpush1.msra.mxu0 %v819
          %865 = vmatprep.subr.mxu0 %v822
          %866 = vmatpush1.msra.mxu0 %v821
          %867 = vmatprep.subr.mxu0 %v824
          %868 = vmatpush1.msra.mxu0 %v823
          %869 = vmatprep.subr.mxu0 %v826
          %870 = vmatpush1.msra.mxu0 %v825
          %871 = vmatprep.subr.mxu0 0.0
          %872 = vmatpush1.msra.mxu0 0.0
          %873 = vmatprep.subr.mxu0 0.0
          %874 = vmatpush1.msra.mxu0 0.0
          %875 = vmatprep.subr.mxu0 0.0
          %876 = vmatpush1.msra.mxu0 0.0
          %877 = vmatprep.subr.mxu0 0.0
          %878 = vmatpush1.msra.mxu0 0.0
          %879 = vmatprep.subr.mxu0 0.0
          %880 = vmatpush1.msra.mxu0 0.0
          %881 = vmatprep.subr.mxu0 0.0
          %882 = vmatpush1.msra.mxu0 0.0
          %883 = vmatprep.subr.mxu0 0.0
          %884 = vmatpush1.msra.mxu0 0.0
          %885 = vmatprep.subr.mxu0 0.0
          %886 = vmatpush1.msra.mxu0 0.0
          %887 = vmatprep.subr.mxu0 0.0
          %888 = vmatpush1.msra.mxu0 0.0
          %889 = vmatprep.subr.mxu0 0.0
          %890 = vmatpush1.msra.mxu0 0.0
          %891 = vmatprep.subr.mxu0 0.0
          %892 = vmatpush1.msra.mxu0 0.0
          %893 = vmatprep.subr.mxu0 0.0
          %894 = vmatpush1.msra.mxu0 0.0
          %895 = vmatprep.subr.mxu0 0.0
          %896 = vmatpush1.msra.mxu0 0.0
          %897 = vmatprep.subr.mxu0 0.0
          %898 = vmatpush1.msra.mxu0 0.0
          %899 = vmatprep.subr.mxu0 0.0
          %900 = vmatpush1.msra.mxu0 0.0
          %901 = vmatprep.subr.mxu0 0.0
          %902 = vmatpush1.msra.mxu0 0.0
          %903 = vmatprep.mubr.f32.mxu0 0.0
          %904 = vmatmul.mubr.f32.gmra.mrb[0].mxu0 %v793
          %v905 = vpop.f32.mrb[0].mxu0
          %v906 = vadd.f32 %v832, %v905
          %v907 = vpop.f32.mrb[0].mxu0
          %v908 = vadd.f32 %v836, %v907
          %909 = vdwg.mxu0
          %v910 = vld [vmem:[#allocation11] sm:$0xff]
          %v911 = vld [vmem:[#allocation11 + $0x8] sm:$0xff]
          %v912 = vld [vmem:[#allocation11 + $0x10] sm:$0xff]
          %v913 = vld [vmem:[#allocation11 + $0x18] sm:$0xff]
          %v914 = vld [vmem:[#allocation11 + $0x20] sm:$0xff]
          %v915 = vld [vmem:[#allocation11 + $0x28] sm:$0xff]
          %v916 = vld [vmem:[#allocation11 + $0x30] sm:$0xff]
          %v917 = vld [vmem:[#allocation11 + $0x38] sm:$0xff]
          %v918 = vld [vmem:[#allocation11 + $0x40] sm:$0xff]
          %v919 = vld [vmem:[#allocation11 + $0x48] sm:$0xff]
          %v920 = vld [vmem:[#allocation11 + $0x50] sm:$0xff]
          %v921 = vld [vmem:[#allocation11 + $0x58] sm:$0xff]
          %v922 = vld [vmem:[#allocation11 + $0x60] sm:$0xff]
          %v923 = vld [vmem:[#allocation11 + $0x68] sm:$0xff]
          %v924 = vld [vmem:[#allocation11 + $0x70] sm:$0xff]
          %v925 = vld [vmem:[#allocation11 + $0x78] sm:$0xff]
          %v926 = vld [vmem:[#allocation11 + $0x80] sm:$0xff]
          %v927 = vld [vmem:[#allocation11 + $0x88] sm:$0xff]
          %v928 = vld [vmem:[#allocation11 + $0x90] sm:$0xff]
          %v929 = vld [vmem:[#allocation11 + $0x98] sm:$0xff]
          %v930 = vld [vmem:[#allocation11 + $0xa0] sm:$0xff]
          %v931 = vld [vmem:[#allocation11 + $0xa8] sm:$0xff]
          %v932 = vld [vmem:[#allocation11 + $0xb0] sm:$0xff]
          %v933 = vld [vmem:[#allocation11 + $0xb8] sm:$0xff]
          %v934 = vld [vmem:[#allocation11 + $0xc0] sm:$0xff]
          %v935 = vld [vmem:[#allocation11 + $0xc8] sm:$0xff]
          %v936 = vld [vmem:[#allocation11 + $0xd0] sm:$0xff]
          %v937 = vld [vmem:[#allocation11 + $0xd8] sm:$0xff]
          %v938 = vld [vmem:[#allocation11 + $0xe0] sm:$0xff]
          %v939 = vld [vmem:[#allocation11 + $0xe8] sm:$0xff]
          %v940 = vld [vmem:[#allocation11 + $0xf0] sm:$0xff]
          %v941 = vld [vmem:[#allocation11 + $0xf8] sm:$0xff]
          %s942 = scalar_lea.vmem [#allocation12], 1
          %v943 = vld [vmem:[%s942] ss:$2 sm:$0x3]
          %v945 = vlaneseq
          %v946 = vshrl.u32 %v945, 7
          %v947 = vsub.s32 0, %v946
          %v948 = vrot.slane %v943, %v947
          %v949 = vlaneseq
          %v950 = vshrl.u32 %v949, 7
          %v951 = vsub.s32 1, %v950
          %v952 = vrot.slane %v943, %v951
          %955 = vmatprep.subr.mxu0 %v911
          %956 = vmatpush1.msra.mxu0 %v910
          %957 = vmatprep.subr.mxu0 %v913
          %958 = vmatpush1.msra.mxu0 %v912
          %959 = vmatprep.subr.mxu0 %v915
          %960 = vmatpush1.msra.mxu0 %v914
          %961 = vmatprep.subr.mxu0 %v917
          %962 = vmatpush1.msra.mxu0 %v916
          %963 = vmatprep.subr.mxu0 %v919
          %964 = vmatpush1.msra.mxu0 %v918
          %965 = vmatprep.subr.mxu0 %v921
          %966 = vmatpush1.msra.mxu0 %v920
          %967 = vmatprep.subr.mxu0 %v923
          %968 = vmatpush1.msra.mxu0 %v922
          %969 = vmatprep.subr.mxu0 %v925
          %970 = vmatpush1.msra.mxu0 %v924
          %971 = vmatprep.subr.mxu0 %v927
          %972 = vmatpush1.msra.mxu0 %v926
          %973 = vmatprep.subr.mxu0 %v929
          %974 = vmatpush1.msra.mxu0 %v928
          %975 = vmatprep.subr.mxu0 %v931
          %976 = vmatpush1.msra.mxu0 %v930
          %977 = vmatprep.subr.mxu0 %v933
          %978 = vmatpush1.msra.mxu0 %v932
          %979 = vmatprep.subr.mxu0 %v935
          %980 = vmatpush1.msra.mxu0 %v934
          %981 = vmatprep.subr.mxu0 %v937
          %982 = vmatpush1.msra.mxu0 %v936
          %983 = vmatprep.subr.mxu0 %v939
          %984 = vmatpush1.msra.mxu0 %v938
          %985 = vmatprep.subr.mxu0 %v941
          %986 = vmatpush1.msra.mxu0 %v940
          %987 = vmatprep.subr.mxu0 0.0
          %988 = vmatpush1.msra.mxu0 0.0
          %989 = vmatprep.subr.mxu0 0.0
          %990 = vmatpush1.msra.mxu0 0.0
          %991 = vmatprep.subr.mxu0 0.0
          %992 = vmatpush1.msra.mxu0 0.0
          %993 = vmatprep.subr.mxu0 0.0
          %994 = vmatpush1.msra.mxu0 0.0
          %995 = vmatprep.subr.mxu0 0.0
          %996 = vmatpush1.msra.mxu0 0.0
          %997 = vmatprep.subr.mxu0 0.0
          %998 = vmatpush1.msra.mxu0 0.0
          %999 = vmatprep.subr.mxu0 0.0
          %1000 = vmatpush1.msra.mxu0 0.0
          %1001 = vmatprep.subr.mxu0 0.0
          %1002 = vmatpush1.msra.mxu0 0.0
          %1003 = vmatprep.subr.mxu0 0.0
          %1004 = vmatpush1.msra.mxu0 0.0
          %1005 = vmatprep.subr.mxu0 0.0
          %1006 = vmatpush1.msra.mxu0 0.0
          %1007 = vmatprep.subr.mxu0 0.0
          %1008 = vmatpush1.msra.mxu0 0.0
          %1009 = vmatprep.subr.mxu0 0.0
          %1010 = vmatpush1.msra.mxu0 0.0
          %1011 = vmatprep.subr.mxu0 0.0
          %1012 = vmatpush1.msra.mxu0 0.0
          %1013 = vmatprep.subr.mxu0 0.0
          %1014 = vmatpush1.msra.mxu0 0.0
          %1015 = vmatprep.subr.mxu0 0.0
          %1016 = vmatpush1.msra.mxu0 0.0
          %1017 = vmatprep.subr.mxu0 0.0
          %1018 = vmatpush1.msra.mxu0 0.0
          %1019 = vmatprep.mubr.f32.mxu0 0.0
          %1020 = vmatmul.mubr.f32.gmra.mrb[0].mxu0 %v794
          %v1021 = vpop.f32.mrb[0].mxu0
          %v1022 = vadd.f32 %v948, %v1021
          %v1023 = vpop.f32.mrb[0].mxu0
          %v1024 = vadd.f32 %v952, %v1023
          %1025 = vdwg.mxu0
          %v1026 = vmul.f32 %v1022, %v906
          %v1027 = vld [vmem:[#allocation14] sm:$0xff]
          %v1028 = vld [vmem:[#allocation14 + $0x8] sm:$0xff]
          %v1029 = vld [vmem:[#allocation14 + $0x10] sm:$0xff]
          %v1030 = vld [vmem:[#allocation14 + $0x18] sm:$0xff]
          %v1031 = vld [vmem:[#allocation14 + $0x20] sm:$0xff]
          %v1032 = vld [vmem:[#allocation14 + $0x28] sm:$0xff]
          %v1033 = vld [vmem:[#allocation14 + $0x30] sm:$0xff]
          %v1034 = vld [vmem:[#allocation14 + $0x38] sm:$0xff]
          %v1035 = vld [vmem:[#allocation14 + $0x40] sm:$0xff]
          %v1036 = vld [vmem:[#allocation14 + $0x48] sm:$0xff]
          %v1037 = vld [vmem:[#allocation14 + $0x50] sm:$0xff]
          %v1038 = vld [vmem:[#allocation14 + $0x58] sm:$0xff]
          %v1039 = vld [vmem:[#allocation14 + $0x60] sm:$0xff]
          %v1040 = vld [vmem:[#allocation14 + $0x68] sm:$0xff]
          %v1041 = vld [vmem:[#allocation14 + $0x70] sm:$0xff]
          %v1042 = vld [vmem:[#allocation14 + $0x78] sm:$0xff]
          %v1043 = vld [vmem:[#allocation14 + $0x80] sm:$0xff]
          %v1044 = vld [vmem:[#allocation14 + $0x88] sm:$0xff]
          %v1045 = vld [vmem:[#allocation14 + $0x90] sm:$0xff]
          %v1046 = vld [vmem:[#allocation14 + $0x98] sm:$0xff]
          %v1047 = vld [vmem:[#allocation14 + $0xa0] sm:$0xff]
          %v1048 = vld [vmem:[#allocation14 + $0xa8] sm:$0xff]
          %v1049 = vld [vmem:[#allocation14 + $0xb0] sm:$0xff]
          %v1050 = vld [vmem:[#allocation14 + $0xb8] sm:$0xff]
          %v1051 = vld [vmem:[#allocation14 + $0xc0] sm:$0xff]
          %v1052 = vld [vmem:[#allocation14 + $0xc8] sm:$0xff]
          %v1053 = vld [vmem:[#allocation14 + $0xd0] sm:$0xff]
          %v1054 = vld [vmem:[#allocation14 + $0xd8] sm:$0xff]
          %v1055 = vld [vmem:[#allocation14 + $0xe0] sm:$0xff]
          %v1056 = vld [vmem:[#allocation14 + $0xe8] sm:$0xff]
          %v1057 = vld [vmem:[#allocation14 + $0xf0] sm:$0xff]
          %v1058 = vld [vmem:[#allocation14 + $0xf8] sm:$0xff]
          %v1059 = vld [vmem:[%s7] sm:$0x3]
          %v1061 = vlaneseq
          %v1062 = vshrl.u32 %v1061, 7
          %v1063 = vsub.s32 0, %v1062
          %v1064 = vrot.slane %v1059, %v1063
          %v1065 = vlaneseq
          %v1066 = vshrl.u32 %v1065, 7
          %v1067 = vsub.s32 1, %v1066
          %v1068 = vrot.slane %v1059, %v1067
          %1071 = vmatprep.subr.mxu0 %v1028
          %1072 = vmatpush1.msra.mxu0 %v1027
          %1073 = vmatprep.subr.mxu0 %v1030
          %1074 = vmatpush1.msra.mxu0 %v1029
          %1075 = vmatprep.subr.mxu0 %v1032
          %1076 = vmatpush1.msra.mxu0 %v1031
          %1077 = vmatprep.subr.mxu0 %v1034
          %1078 = vmatpush1.msra.mxu0 %v1033
          %1079 = vmatprep.subr.mxu0 %v1036
          %1080 = vmatpush1.msra.mxu0 %v1035
          %1081 = vmatprep.subr.mxu0 %v1038
          %1082 = vmatpush1.msra.mxu0 %v1037
          %1083 = vmatprep.subr.mxu0 %v1040
          %1084 = vmatpush1.msra.mxu0 %v1039
          %1085 = vmatprep.subr.mxu0 %v1042
          %1086 = vmatpush1.msra.mxu0 %v1041
          %1087 = vmatprep.subr.mxu0 %v1044
          %1088 = vmatpush1.msra.mxu0 %v1043
          %1089 = vmatprep.subr.mxu0 %v1046
          %1090 = vmatpush1.msra.mxu0 %v1045
          %1091 = vmatprep.subr.mxu0 %v1048
          %1092 = vmatpush1.msra.mxu0 %v1047
          %1093 = vmatprep.subr.mxu0 %v1050
          %1094 = vmatpush1.msra.mxu0 %v1049
          %1095 = vmatprep.subr.mxu0 %v1052
          %1096 = vmatpush1.msra.mxu0 %v1051
          %1097 = vmatprep.subr.mxu0 %v1054
          %1098 = vmatpush1.msra.mxu0 %v1053
          %1099 = vmatprep.subr.mxu0 %v1056
          %1100 = vmatpush1.msra.mxu0 %v1055
          %1101 = vmatprep.subr.mxu0 %v1058
          %1102 = vmatpush1.msra.mxu0 %v1057
          %1103 = vmatprep.subr.mxu0 0.0
          %1104 = vmatpush1.msra.mxu0 0.0
          %1105 = vmatprep.subr.mxu0 0.0
          %1106 = vmatpush1.msra.mxu0 0.0
          %1107 = vmatprep.subr.mxu0 0.0
          %1108 = vmatpush1.msra.mxu0 0.0
          %1109 = vmatprep.subr.mxu0 0.0
          %1110 = vmatpush1.msra.mxu0 0.0
          %1111 = vmatprep.subr.mxu0 0.0
          %1112 = vmatpush1.msra.mxu0 0.0
          %1113 = vmatprep.subr.mxu0 0.0
          %1114 = vmatpush1.msra.mxu0 0.0
          %1115 = vmatprep.subr.mxu0 0.0
          %1116 = vmatpush1.msra.mxu0 0.0
          %1117 = vmatprep.subr.mxu0 0.0
          %1118 = vmatpush1.msra.mxu0 0.0
          %1119 = vmatprep.subr.mxu0 0.0
          %1120 = vmatpush1.msra.mxu0 0.0
          %1121 = vmatprep.subr.mxu0 0.0
          %1122 = vmatpush1.msra.mxu0 0.0
          %1123 = vmatprep.subr.mxu0 0.0
          %1124 = vmatpush1.msra.mxu0 0.0
          %1125 = vmatprep.subr.mxu0 0.0
          %1126 = vmatpush1.msra.mxu0 0.0
          %1127 = vmatprep.subr.mxu0 0.0
          %1128 = vmatpush1.msra.mxu0 0.0
          %1129 = vmatprep.subr.mxu0 0.0
          %1130 = vmatpush1.msra.mxu0 0.0
          %1131 = vmatprep.subr.mxu0 0.0
          %1132 = vmatpush1.msra.mxu0 0.0
          %1133 = vmatprep.subr.mxu0 0.0
          %1134 = vmatpush1.msra.mxu0 0.0
          %1135 = vmatprep.mubr.f32.mxu0 0.0
          %1136 = vmatmul.mubr.f32.gmra.mrb[0].mxu0 %v1026
          %v1137 = vpop.f32.mrb[0].mxu0
          %v1138 = vadd.f32 %v1064, %v1137
          %v1139 = vpop.f32.mrb[0].mxu0
          %v1140 = vadd.f32 %v1068, %v1139
          %1141 = vdwg.mxu0
          %v1142 = vld [vmem:[%s10] sm:$0x1]
          %v1143 = vld [vmem:[%s11] sm:$0x1]
          %1144 = vadd.xlane.f32.xlu0 %v1138
          %v1145 = vpop.xlane.xlu0 %1144
          %v1146 = vmul.f32 %v1138, %v1138
          %1147 = vadd.xlane.f32.xlu0 %v1146
          %v1148 = vpop.xlane.xlu0 %1147
          %v1149 = vmul.f32 %v1145, 0.015625
          %v1150 = vmul.f32 %v1148, 0.015625
          %v1151 = vmul.f32 %v1149, %v1149
          %v1152 = vsub.f32 %v1150, %v1151
          %v1153 = vsub.f32 %v1138, %v1149
          %v1154 = vadd.f32 %v1152, 1e-05
          %v1155 = vrsqrt.pop %v1154
          %v1156 = vmul.f32 %v1153, %v1155
          %v1157 = vlaneseq
          %v1158 = vshrl.u32 %v1157, 7
          %v1159 = vsub.s32 0, %v1158
          %v1160 = vrot.slane %v1142, %v1159
          %v1161 = vmul.f32 %v1156, %v1160
          %v1162 = vlaneseq
          %v1163 = vshrl.u32 %v1162, 7
          %v1164 = vsub.s32 0, %v1163
          %v1165 = vrot.slane %v1143, %v1164
          %v1166 = vadd.f32 %v1161, %v1165
          %v1167 = vxor.u32 %v1166, 2147483648
          %v1168 = vmul.f32 %v1167, 1.442695
          %v1169 = vpow.pop %v1168
          %v1170 = vadd.f32 %v1169, 1.0
          %v1171 = vrcp.pop %v1170
          %v1172 = vmul.f32 1.0, %v1171
          %v1173 = vld [vmem:[%s10 + $0x1] sm:$0x1]
          %v1174 = vld [vmem:[%s11 + $0x1] sm:$0x1]
          %1175 = vadd.xlane.f32.xlu0 %v1140
          %v1176 = vpop.xlane.xlu0 %1175
          %v1177 = vmul.f32 %v1140, %v1140
          %1178 = vadd.xlane.f32.xlu0 %v1177
          %v1179 = vpop.xlane.xlu0 %1178
          %v1180 = vmul.f32 %v1176, 0.015625
          %v1181 = vmul.f32 %v1179, 0.015625
          %v1182 = vmul.f32 %v1180, %v1180
          %v1183 = vsub.f32 %v1181, %v1182
          %v1184 = vsub.f32 %v1140, %v1180
          %v1185 = vadd.f32 %v1183, 1e-05
          %v1186 = vrsqrt.pop %v1185
          %v1187 = vmul.f32 %v1184, %v1186
          %v1188 = vlaneseq
          %v1189 = vshrl.u32 %v1188, 7
          %v1190 = vsub.s32 0, %v1189
          %v1191 = vrot.slane %v1173, %v1190
          %v1192 = vmul.f32 %v1187, %v1191
          %v1193 = vlaneseq
          %v1194 = vshrl.u32 %v1193, 7
          %v1195 = vsub.s32 0, %v1194
          %v1196 = vrot.slane %v1174, %v1195
          %v1197 = vadd.f32 %v1192, %v1196
          %v1198 = vxor.u32 %v1197, 2147483648
          %v1199 = vmul.f32 %v1198, 1.442695
          %v1200 = vpow.pop %v1199
          %v1201 = vadd.f32 %v1200, 1.0
          %v1202 = vrcp.pop %v1201
          %v1203 = vmul.f32 1.0, %v1202
          %v1204 = vld [vmem:[%s10 + $0x2] sm:$0x1]
          %v1205 = vld [vmem:[%s11 + $0x2] sm:$0x1]
          %1206 = vadd.xlane.f32.xlu0 %v908
          %v1207 = vpop.xlane.xlu0 %1206
          %v1208 = vmul.f32 %v908, %v908
          %1209 = vadd.xlane.f32.xlu0 %v1208
          %v1210 = vpop.xlane.xlu0 %1209
          %v1211 = vmul.f32 %v1207, 0.015625
          %v1212 = vmul.f32 %v1210, 0.015625
          %v1213 = vmul.f32 %v1211, %v1211
          %v1214 = vsub.f32 %v1212, %v1213
          %v1215 = vsub.f32 %v908, %v1211
          %v1216 = vadd.f32 %v1214, 1e-05
          %v1217 = vrsqrt.pop %v1216
          %v1218 = vmul.f32 %v1215, %v1217
          %v1219 = vlaneseq
          %v1220 = vshrl.u32 %v1219, 7
          %v1221 = vsub.s32 0, %v1220
          %v1222 = vrot.slane %v1204, %v1221
          %v1223 = vmul.f32 %v1218, %v1222
          %v1224 = vlaneseq
          %v1225 = vshrl.u32 %v1224, 7
          %v1226 = vsub.s32 0, %v1225
          %v1227 = vrot.slane %v1205, %v1226
          %v1228 = vadd.f32 %v1223, %v1227
          %v1229 = vld [vmem:[%s10 + $0x3] sm:$0x1]
          %v1230 = vld [vmem:[%s11 + $0x3] sm:$0x1]
          %1231 = vadd.xlane.f32.xlu0 %v1024
          %v1232 = vpop.xlane.xlu0 %1231
          %v1233 = vmul.f32 %v1024, %v1024
          %1234 = vadd.xlane.f32.xlu0 %v1233
          %v1235 = vpop.xlane.xlu0 %1234
          %v1236 = vmul.f32 %v1232, 0.015625
          %v1237 = vmul.f32 %v1235, 0.015625
          %v1238 = vmul.f32 %v1236, %v1236
          %v1239 = vsub.f32 %v1237, %v1238
          %v1240 = vsub.f32 %v1024, %v1236
          %v1241 = vadd.f32 %v1239, 1e-05
          %v1242 = vrsqrt.pop %v1241
          %v1243 = vmul.f32 %v1240, %v1242
          %v1244 = vlaneseq
          %v1245 = vshrl.u32 %v1244, 7
          %v1246 = vsub.s32 0, %v1245
          %v1247 = vrot.slane %v1229, %v1246
          %v1248 = vmul.f32 %v1243, %v1247
          %v1249 = vlaneseq
          %v1250 = vshrl.u32 %v1249, 7
          %v1251 = vsub.s32 0, %v1250
          %v1252 = vrot.slane %v1230, %v1251
          %v1253 = vadd.f32 %v1248, %v1252
          %v1254 = vmul.f32 %v1172, %v1228
          %v1255 = vmul.f32 %v1203, %v1253
          %v1256 = vadd.f32 %v1254, %v1255
          %v1257 = vld [vmem:[#allocation15] sm:$0xff]
          %v1258 = vld [vmem:[#allocation15 + $0x8] sm:$0xff]
          %v1259 = vld [vmem:[#allocation15 + $0x10] sm:$0xff]
          %v1260 = vld [vmem:[#allocation15 + $0x18] sm:$0xff]
          %v1261 = vld [vmem:[#allocation15 + $0x20] sm:$0xff]
          %v1262 = vld [vmem:[#allocation15 + $0x28] sm:$0xff]
          %v1263 = vld [vmem:[#allocation15 + $0x30] sm:$0xff]
          %v1264 = vld [vmem:[#allocation15 + $0x38] sm:$0xff]
          %v1265 = vld [vmem:[#allocation15 + $0x40] sm:$0xff]
          %v1266 = vld [vmem:[#allocation15 + $0x48] sm:$0xff]
          %v1267 = vld [vmem:[#allocation15 + $0x50] sm:$0xff]
          %v1268 = vld [vmem:[#allocation15 + $0x58] sm:$0xff]
          %v1269 = vld [vmem:[#allocation15 + $0x60] sm:$0xff]
          %v1270 = vld [vmem:[#allocation15 + $0x68] sm:$0xff]
          %v1271 = vld [vmem:[#allocation15 + $0x70] sm:$0xff]
          %v1272 = vld [vmem:[#allocation15 + $0x78] sm:$0xff]
          %v1273 = vld [vmem:[%s9] sm:$0x1]
          %v1275 = vlaneseq
          %v1276 = vshrl.u32 %v1275, 7
          %v1277 = vsub.s32 0, %v1276
          %v1278 = vrot.slane %v1273, %v1277
          %1280 = vmatprep.subr.mxu0 0.0
          %1281 = vmatpush1.msra.mxu0 %v1257
          %1282 = vmatprep.subr.mxu0 0.0
          %1283 = vmatpush1.msra.mxu0 %v1258
          %1284 = vmatprep.subr.mxu0 0.0
          %1285 = vmatpush1.msra.mxu0 %v1259
          %1286 = vmatprep.subr.mxu0 0.0
          %1287 = vmatpush1.msra.mxu0 %v1260
          %1288 = vmatprep.subr.mxu0 0.0
          %1289 = vmatpush1.msra.mxu0 %v1261
          %1290 = vmatprep.subr.mxu0 0.0
          %1291 = vmatpush1.msra.mxu0 %v1262
          %1292 = vmatprep.subr.mxu0 0.0
          %1293 = vmatpush1.msra.mxu0 %v1263
          %1294 = vmatprep.subr.mxu0 0.0
          %1295 = vmatpush1.msra.mxu0 %v1264
          %1296 = vmatprep.subr.mxu0 0.0
          %1297 = vmatpush1.msra.mxu0 %v1265
          %1298 = vmatprep.subr.mxu0 0.0
          %1299 = vmatpush1.msra.mxu0 %v1266
          %1300 = vmatprep.subr.mxu0 0.0
          %1301 = vmatpush1.msra.mxu0 %v1267
          %1302 = vmatprep.subr.mxu0 0.0
          %1303 = vmatpush1.msra.mxu0 %v1268
          %1304 = vmatprep.subr.mxu0 0.0
          %1305 = vmatpush1.msra.mxu0 %v1269
          %1306 = vmatprep.subr.mxu0 0.0
          %1307 = vmatpush1.msra.mxu0 %v1270
          %1308 = vmatprep.subr.mxu0 0.0
          %1309 = vmatpush1.msra.mxu0 %v1271
          %1310 = vmatprep.subr.mxu0 0.0
          %1311 = vmatpush1.msra.mxu0 %v1272
          %1312 = vmatprep.subr.mxu0 0.0
          %1313 = vmatpush1.msra.mxu0 0.0
          %1314 = vmatprep.subr.mxu0 0.0
          %1315 = vmatpush1.msra.mxu0 0.0
          %1316 = vmatprep.subr.mxu0 0.0
          %1317 = vmatpush1.msra.mxu0 0.0
          %1318 = vmatprep.subr.mxu0 0.0
          %1319 = vmatpush1.msra.mxu0 0.0
          %1320 = vmatprep.subr.mxu0 0.0
          %1321 = vmatpush1.msra.mxu0 0.0
          %1322 = vmatprep.subr.mxu0 0.0
          %1323 = vmatpush1.msra.mxu0 0.0
          %1324 = vmatprep.subr.mxu0 0.0
          %1325 = vmatpush1.msra.mxu0 0.0
          %1326 = vmatprep.subr.mxu0 0.0
          %1327 = vmatpush1.msra.mxu0 0.0
          %1328 = vmatprep.subr.mxu0 0.0
          %1329 = vmatpush1.msra.mxu0 0.0
          %1330 = vmatprep.subr.mxu0 0.0
          %1331 = vmatpush1.msra.mxu0 0.0
          %1332 = vmatprep.subr.mxu0 0.0
          %1333 = vmatpush1.msra.mxu0 0.0
          %1334 = vmatprep.subr.mxu0 0.0
          %1335 = vmatpush1.msra.mxu0 0.0
          %1336 = vmatprep.subr.mxu0 0.0
          %1337 = vmatpush1.msra.mxu0 0.0
          %1338 = vmatprep.subr.mxu0 0.0
          %1339 = vmatpush1.msra.mxu0 0.0
          %1340 = vmatprep.subr.mxu0 0.0
          %1341 = vmatpush1.msra.mxu0 0.0
          %1342 = vmatprep.subr.mxu0 0.0
          %1343 = vmatpush1.msra.mxu0 0.0
          %1344 = vmatprep.mubr.f32.mxu0 0.0
          %1345 = vmatmul.mubr.f32.gmra.mrb[0].mxu0 %v1256
          %v1346 = vpop.f32.mrb[0].mxu0
          %v1347 = vadd.f32 %v1278, %v1346
          %v1348 = vpop.f32.mrb[0].mxu0
          %1349 = vdwg.mxu0
          %v1350 = vld [vmem:[%s10 + $0x4] sm:$0x1]
          %v1351 = vld [vmem:[%s11 + $0x4] sm:$0x1]
          %1352 = vadd.xlane.f32.xlu0 %v1347
          %v1353 = vpop.xlane.xlu0 %1352
          %v1354 = vmul.f32 %v1347, %v1347
          %1355 = vadd.xlane.f32.xlu0 %v1354
          %v1356 = vpop.xlane.xlu0 %1355
          %v1357 = vmul.f32 %v1353, 0.015625
          %v1358 = vmul.f32 %v1356, 0.015625
          %v1359 = vmul.f32 %v1357, %v1357
          %v1360 = vsub.f32 %v1358, %v1359
          %v1361 = vsub.f32 %v1347, %v1357
          %v1362 = vadd.f32 %v1360, 1e-05
          %v1363 = vrsqrt.pop %v1362
          %v1364 = vmul.f32 %v1361, %v1363
          %v1365 = vlaneseq
          %v1366 = vshrl.u32 %v1365, 7
          %v1367 = vsub.s32 0, %v1366
          %v1368 = vrot.slane %v1350, %v1367
          %v1369 = vmul.f32 %v1364, %v1368
          %v1370 = vlaneseq
          %v1371 = vshrl.u32 %v1370, 7
          %v1372 = vsub.s32 0, %v1371
          %v1373 = vrot.slane %v1351, %v1372
          %v1374 = vadd.f32 %v1369, %v1373
          %v1375 = vmax.f32 %v1374, 0.0
          %1376 = vst [vmem:[%s594] sm:$0xff] %v1375
        $region108: #{tpu_custom_call.1} parent=67 // pred_fallthru
          _
        %s1377 = sand.u32 %s326, 1
        %s1378 = scalar_lea.sflag [#allocation5], %s1377
        %s1379 = sand.u32 %s326, 1
        %s1380 = smul.addr %s1379, 8
        %s1381 = scalar_lea.vmem [#allocation17], %s1380
        // Predicated region
        $region109: #{tpu_custom_call.1} parent=67 // pred_check
          %p1382 = pneg %p336
        $region110: #{tpu_custom_call.1} parent=67 // pred_check_branch
          %1384 = sbr.rel (%p1382) target = $region112
        $region111: #{tpu_custom_call.1} parent=67 // pred_region
          %s1386 = ssub.s32 128, 128
          %1387 = vsyncadd %s1378, %s1386
          %s1388 = smul.addr %s39, 128
          %s1389 = scalar_lea.hbm %s12, %s1388
          %s1391 = sshll.u32 %s1381, 4
          %s1392 = int_to_ptr.vmem [resolvable:$true] %s1391
          %1394 = dma.vmem_to_hbm [thread:$0]  %s1392, 128, %s1389, %s1378
        $region112: #{tpu_custom_call.1} parent=67 // pred_fallthru
          _
      $region68: #{tpu_custom_call.1} parent=5 // pred_fallthru
        _
      %p1395 = scmp.le.s32.totalorder 2, %s30
      // Predicated region
      $region113: #{tpu_custom_call.1} parent=5 // pred_check
        %p1396 = pneg %p1395
      $region114: #{tpu_custom_call.1} parent=5 // pred_check_branch
        %1398 = sbr.rel (%p1396) target = $region116
      $region115: #{tpu_custom_call.1} parent=5 // pred_region
        %s1399 = ssub.s32 %s30, 2
        // Predicated region
        $region117: #{tpu_custom_call.1} parent=115 // pred_check
          %p1400 = pneg %p342
        $region118: #{tpu_custom_call.1} parent=115 // pred_check_branch
          %1402 = sbr.rel (%p1400) target = $region120
        $region119: #{tpu_custom_call.1} parent=115 // pred_region
          %s1403 = sand.u32 %s327, 1
          %s1404 = scalar_lea.sflag [#allocation5], %s1403
          %s1405 = sand.u32 %s327, 1
          %s1406 = smul.addr %s1405, 8
          %s1407 = scalar_lea.vmem [#allocation17], %s1406
          %1408 = dma.done %s1404, 128
        $region120: #{tpu_custom_call.1} parent=115 // pred_fallthru
          _
      $region116: #{tpu_custom_call.1} parent=5 // pred_fallthru
        _
    $region6: #{tpu_custom_call.1} parent=1 // loop_footer
      %s34 = sadd.s32 1, %s30
    $region7: #{tpu_custom_call.1} parent=1 // loop_footer_branch
      %29 = sbr.rel target = $region3
    $region8: #{tpu_custom_call.1} parent=1 // loop_exit
      _
    %1409 = vsyncpa [#allocation4], 1
    %s1410 = scalar_lea.sflag [#allocation4], 1
    %1411 = vsyncpa %s1410, 1
    %1412 = vsyncpa [#allocation7], 1
    %s1413 = scalar_lea.sflag [#allocation7], 1
    %1414 = vsyncpa %s1413, 1
    %1415 = vsyncpa [#allocation10], 1
    %1416 = vsyncpa [#allocation13], 1
    %1417 = vsyncpa [#allocation16], 1
    %1418 = vsyncpa [#allocation5], 1
    %s1419 = scalar_lea.sflag [#allocation5], 1
    %1420 = vsyncpa %s1419, 1

</llo_original>
